<compile_context>
chip_gen: v7x
topology: tpu7x:2x2x1
jax: 0.10.0
libtpu: 0.0.40
codegen_flags: <defaults>
</compile_context>

<pallas_src>
import jax
import jax.numpy as jnp
from jax.experimental import pallas as pl
from jax.experimental.pallas import tpu as pltpu


# ----------------------------------------------------------------------------
# Config (small, deterministic stand-in for CFG)
# ----------------------------------------------------------------------------
class CFG:
    dim_emb = 16     # speaker-embedding dim
    dim_neck = 8     # LSTM hidden per direction
    freq = 4         # down-sampling factor for codes


N_MELS = 80
CONV_CH = 512
KSIZE = 5
VMEM_LIMIT = 32 * 1024 * 1024   # leave headroom even on v7x (64 MiB/TC)


# ----------------------------------------------------------------------------
# Kernel 1: Conv1d(k=5, same pad) + folded BatchNorm + ReLU  (one grid step / b)
#   5 taps are merged into a single (T, K*Cin) @ (K*Cin, Cout) bf16 matmul.
# ----------------------------------------------------------------------------
def _conv_bn_relu_kernel(xp_ref, w_ref, scale_ref, bias_ref, out_ref):
    # xp_ref:   (T + K - 1, Cin_pad)   bf16, zero-padded (time + channel) input
    # w_ref:    (K * Cin_pad, Cout)    bf16
    # scale_ref,bias_ref: (1, Cout)    f32 folded BN (+conv bias) affine
    # out_ref:  (T, Cout)              bf16
    T = out_ref.shape[0]
    cin = xp_ref.shape[1]
    K = w_ref.shape[0] // cin
    # im2col: K shifted (T, Cin) slices concatenated along lanes -> (T, K*Cin)
    patches = jnp.concatenate([xp_ref[pl.ds(k, T), :] for k in range(K)], axis=-1)
    acc = jnp.dot(patches, w_ref[...], preferred_element_type=jnp.float32)
    y = acc * scale_ref[...] + bias_ref[...]
    out_ref[...] = jnp.maximum(y, 0.0).astype(out_ref.dtype)


def conv_bn_relu(x, w2d, scale, bias, cin_pad):
    # x: (B, T, Cin) bf16 -> (B, T, Cout) bf16
    B, T, Cin = x.shape
    Cout = w2d.shape[1]
    K = w2d.shape[0] // cin_pad
    pad_t = (K - 1) // 2
    xp = jnp.pad(x, ((0, 0), (pad_t, pad_t), (0, cin_pad - Cin)))
    Tp = T + 2 * pad_t
    return pl.pallas_call(
        _conv_bn_relu_kernel,
        out_shape=jax.ShapeDtypeStruct((B, T, Cout), jnp.bfloat16),
        grid=(B,),
        in_specs=[
            pl.BlockSpec((None, Tp, cin_pad), lambda b: (b, 0, 0)),
            pl.BlockSpec((K * cin_pad, Cout), lambda b: (0, 0)),
            pl.BlockSpec((1, Cout), lambda b: (0, 0)),
            pl.BlockSpec((1, Cout), lambda b: (0, 0)),
        ],
        out_specs=pl.BlockSpec((None, T, Cout), lambda b: (b, 0, 0)),
        compiler_params=pltpu.CompilerParams(
            dimension_semantics=("parallel",),
            vmem_limit_bytes=VMEM_LIMIT,
        ),
    )(xp, w2d, scale, bias)


# ----------------------------------------------------------------------------
# Kernel 2: 2-layer bidirectional LSTM, whole batch per invocation.
#   Input projections hoisted to one matmul per layer; fori_loop recurrence
#   advances forward (t = s) and backward (t = T-1-s) directions together.
# ----------------------------------------------------------------------------
def _bilstm_kernel(x_ref, w0i_ref, w0h_ref, b0_ref, w1i_ref, w1h_ref, b1_ref,
                   out_ref, gx_ref, hf_ref, hb_ref):
    # x_ref:   (T*B, D)        bf16, time-major flattened input
    # w*i:     (Din, 8H)       packed [Wi_fwd | Wi_bwd] (layer0 bf16, layer1 f32)
    # w*h:     (2H, 8H)        block-diagonal [Wh_fwd 0; 0 Wh_bwd], f32
    # b*:      (1, 8H)         packed combined biases, f32
    # out_ref: (T, B, 2H)      f32, [fwd | bwd] hidden per timestep
    # gx_ref:  (T, B, 8H)      scratch, hoisted input-gate projections
    # hf_ref:  (T, B, H)       scratch, forward hidden states
    # hb_ref:  (T, B, H)       scratch, backward hidden states
    T, B, H2 = out_ref.shape
    H = H2 // 2
    H4 = 4 * H

    def run_layer(x2d, wi, wh, b):
        # Hoisted input projection for ALL timesteps + both directions.
        gx = jnp.dot(x2d, wi, preferred_element_type=jnp.float32) + b
        gx_ref[...] = gx.reshape(T, B, 2 * H4)

        def step(s, carry):
            h_cat, c_cat = carry                      # (B, 2H) each: [fwd | bwd]
            tf = s
            tb = T - 1 - s
            g = (jnp.concatenate([gx_ref[tf][:, :H4], gx_ref[tb][:, H4:]],
                                 axis=-1)
                 + jnp.dot(h_cat, wh, preferred_element_type=jnp.float32))

            def cell(gd, c):                          # gd: (B, 4H), c: (B, H)
                i_g = jax.nn.sigmoid(gd[:, 0:H])
                f_g = jax.nn.sigmoid(gd[:, H:2 * H])
                g_g = jnp.tanh(gd[:, 2 * H:3 * H])
                o_g = jax.nn.sigmoid(gd[:, 3 * H:])
                c_new = f_g * c + i_g * g_g
                return o_g * jnp.tanh(c_new), c_new

            h_f, c_f = cell(g[:, :H4], c_cat[:, :H])
            h_b, c_b = cell(g[:, H4:], c_cat[:, H:])
            hf_ref[tf] = h_f
            hb_ref[tb] = h_b
            return (jnp.concatenate([h_f, h_b], axis=-1),
                    jnp.concatenate([c_f, c_b], axis=-1))

        zeros = jnp.zeros((B, 2 * H), jnp.float32)
        jax.lax.fori_loop(0, T, step, (zeros, zeros))

    # layer 0 (input dim = D, bf16 MXU inputs, f32 accumulation)
    run_layer(x_ref[...], w0i_ref[...], w0h_ref[...], b0_ref[...])
    l0 = jnp.concatenate([hf_ref[...], hb_ref[...]], axis=-1)   # (T, B, 2H) f32
    # layer 1 (input dim = 2H, f32)
    run_layer(l0.reshape(T * B, 2 * H), w1i_ref[...], w1h_ref[...], b1_ref[...])
    out_ref[...] = jnp.concatenate([hf_ref[...], hb_ref[...]], axis=-1)


def bilstm(x_tbd, lstm_params):
    # x_tbd: (T, B, D) bf16 -> outputs (T, B, 2H) f32
    w0i, w0h, b0, w1i, w1h, b1 = lstm_params
    T, B, D = x_tbd.shape
    H = CFG.dim_neck
    x2d = x_tbd.reshape(T * B, D)
    vm = pl.BlockSpec(memory_space=pltpu.MemorySpace.VMEM)
    return pl.pallas_call(
        _bilstm_kernel,
        out_shape=jax.ShapeDtypeStruct((T, B, 2 * H), jnp.float32),
        in_specs=[vm] * 7,
        out_specs=vm,
        scratch_shapes=[
            pltpu.VMEM((T, B, 8 * H), jnp.float32),   # hoisted gate projections
            pltpu.VMEM((T, B, H), jnp.float32),       # forward hidden states
            pltpu.VMEM((T, B, H), jnp.float32),       # backward hidden states
        ],
        compiler_params=pltpu.CompilerParams(vmem_limit_bytes=VMEM_LIMIT),
    )(x2d, w0i, w0h, b0, w1i, w1h, b1)


# ----------------------------------------------------------------------------
# Encoder forward (Pallas kernels + glue)
# ----------------------------------------------------------------------------
def encoder_forward(spc, emb, kparams):
    # spc: (B, 1, T, 80), emb: (B, dim_emb)  -- mirrors the PyTorch forward
    x = spc[:, 0, :, :]                                   # (B, T, 80)
    B, T, _ = x.shape
    H = CFG.dim_neck
    assert T % CFG.freq == 0, "T must be a multiple of CFG.freq"
    e = jnp.broadcast_to(emb[:, None, :], (B, T, emb.shape[-1]))
    x = jnp.concatenate([x, e], axis=-1).astype(jnp.bfloat16)   # (B, T, 80+emb)

    for (w2d, scale, bias, cin_pad) in kparams["conv"]:
        x = conv_bn_relu(x, w2d, scale, bias, cin_pad)    # (B, T, 512) bf16

    x_tbd = jnp.transpose(x, (1, 0, 2))                   # (T, B, 512)
    outputs = bilstm(x_tbd, kparams["lstm"])              # (T, B, 2H) f32

    # strided code extraction (no per-index Python slicing loop)
    fwd = outputs[CFG.freq - 1::CFG.freq, :, :H]          # (T/freq, B, H)
    bwd = outputs[::CFG.freq, :, H:]                      # (T/freq, B, H)
    codes_all = jnp.concatenate([fwd, bwd], axis=-1)      # (T/freq, B, 2H)
    return [codes_all[i] for i in range(T // CFG.freq)]


# ----------------------------------------------------------------------------
# Pure-JAX reference (same math, no Pallas) for a sanity check
# ----------------------------------------------------------------------------
def encoder_ref(spc, emb, raw):
    x = spc[:, 0, :, :]
    B, T, _ = x.shape
    e = jnp.broadcast_to(emb[:, None, :], (B, T, emb.shape[-1]))
    x = jnp.concatenate([x, e], axis=-1).astype(jnp.bfloat16)

    for (w, scale, bias) in raw["conv"]:
        K = w.shape[0]
        pad = (K - 1) // 2
        xp = jnp.pad(x, ((0, 0), (pad, pad), (0, 0)))
        w_bf = w.astype(jnp.bfloat16)
        acc = sum(
            jnp.einsum("btc,cd->btd", xp[:, k:k + T], w_bf[k],
                       preferred_element_type=jnp.float32)
            for k in range(K))
        y = acc * scale[None, None, :] + bias[None, None, :]
        x = jnp.maximum(y, 0.0).astype(jnp.bfloat16)

    H = CFG.dim_neck
    w0i, w0h, b0, w1i, w1h, b1 = raw["lstm"]

    def run_dir(xseq, wi, wh, b, reverse):
        gx = jnp.einsum("btd,dg->btg", xseq, wi.astype(xseq.dtype),
                        preferred_element_type=jnp.float32) + b
        h = jnp.zeros((B, H), jnp.float32)
        c = jnp.zeros((B, H), jnp.float32)
        outs = [None] * T
        ts = range(T - 1, -1, -1) if reverse else range(T)
        for t in ts:
            g = gx[:, t] + h @ wh
            i_g = jax.nn.sigmoid(g[:, :H])
            f_g = jax.nn.sigmoid(g[:, H:2 * H])
            g_g = jnp.tanh(g[:, 2 * H:3 * H])
            o_g = jax.nn.sigmoid(g[:, 3 * H:])
            c = f_g * c + i_g * g_g
            h = o_g * jnp.tanh(c)
            outs[t] = h
        return jnp.stack(outs, axis=1)                    # (B, T, H)

    l0 = jnp.concatenate([run_dir(x, w0i[0], w0h[0], b0[0], False),
                          run_dir(x, w0i[1], w0h[1], b0[1], True)], axis=-1)
    outputs = jnp.concatenate([run_dir(l0, w1i[0], w1h[0], b1[0], False),
                               run_dir(l0, w1i[1], w1h[1], b1[1], True)],
                              axis=-1)

    codes = []
    for i in range(0, T, CFG.freq):
        codes.append(jnp.concatenate(
            [outputs[:, i + CFG.freq - 1, :H], outputs[:, i, H:]], axis=-1))
    return codes


# ----------------------------------------------------------------------------
# Deterministic synthetic parameters (BatchNorm folded in eval mode)
# ----------------------------------------------------------------------------
def init_params(key):
    ks = iter(jax.random.split(key, 40))
    H = CFG.dim_neck

    conv = []
    c_ins = [N_MELS + CFG.dim_emb, CONV_CH, CONV_CH]
    for c_in in c_ins:
        w = jax.random.normal(next(ks), (KSIZE, c_in, CONV_CH), jnp.float32)
        w = w / jnp.sqrt(float(c_in * KSIZE))
        b_conv = 0.1 * jax.random.normal(next(ks), (CONV_CH,), jnp.float32)
        gamma = 1.0 + 0.1 * jax.random.normal(next(ks), (CONV_CH,), jnp.float32)
        beta = 0.1 * jax.random.normal(next(ks), (CONV_CH,), jnp.float32)
        mean = 0.1 * jax.random.normal(next(ks), (CONV_CH,), jnp.float32)
        var = 1.0 + 0.1 * jax.random.uniform(next(ks), (CONV_CH,), jnp.float32)
        scale = gamma / jnp.sqrt(var + 1e-5)
        bias = beta - mean * scale + b_conv * scale
        conv.append((w, scale, bias))

    def wmat(k, shape, fan_in):
        return jax.random.normal(k, shape, jnp.float32) / jnp.sqrt(float(fan_in))

    w0i = wmat(next(ks), (2, CONV_CH, 4 * H), CONV_CH)
    w0h = wmat(next(ks), (2, H, 4 * H), H)
    b0 = 0.1 * jax.random.normal(next(ks), (2, 4 * H), jnp.float32)  # b_ih+b_hh
    w1i = wmat(next(ks), (2, 2 * H, 4 * H), 2 * H)
    w1h = wmat(next(ks), (2, H, 4 * H), H)
    b1 = 0.1 * jax.random.normal(next(ks), (2, 4 * H), jnp.float32)

    return {"conv": conv, "lstm": (w0i, w0h, b0, w1i, w1h, b1)}


def prepare_params(raw):
    """Repack raw (PyTorch-style) params into the kernel-friendly layout."""
    conv_k = []
    for (w, scale, bias) in raw["conv"]:
        K, Cin, Cout = w.shape
        cin_pad = ((Cin + 127) // 128) * 128
        w_p = jnp.pad(w, ((0, 0), (0, cin_pad - Cin), (0, 0)))
        w2d = w_p.reshape(K * cin_pad, Cout).astype(jnp.bfloat16)
        conv_k.append((w2d, scale.reshape(1, Cout), bias.reshape(1, Cout),
                       cin_pad))

    def pack(w_i, w_h, b, in_dtype):
        H4 = w_i.shape[2]
        H = H4 // 4
        wi_p = jnp.concatenate([w_i[0], w_i[1]], axis=-1).astype(in_dtype)
        wh_p = jnp.zeros((2 * H, 2 * H4), jnp.float32)
        wh_p = wh_p.at[:H, :H4].set(w_h[0])
        wh_p = wh_p.at[H:, H4:].set(w_h[1])
        b_p = jnp.concatenate([b[0], b[1]], axis=-1).reshape(1, 2 * H4)
        return wi_p, wh_p, b_p

    w0i, w0h, b0, w1i, w1h, b1 = raw["lstm"]
    l0 = pack(w0i, w0h, b0, jnp.bfloat16)   # layer-0 input proj runs in bf16
    l1 = pack(w1i, w1h, b1, jnp.float32)
    return {"conv": conv_k, "lstm": (*l0, *l1)}


# ----------------------------------------------------------------------------
if __name__ == "__main__":
    key = jax.random.PRNGKey(0)
    k_spc, k_emb, k_par = jax.random.split(key, 3)

    B, T = 2, 8
    spc = jax.random.normal(k_spc, (B, 1, T, N_MELS), jnp.float32)
    emb = jax.random.normal(k_emb, (B, CFG.dim_emb), jnp.float32)
    raw = init_params(k_par)
    kparams = prepare_params(raw)

    codes = encoder_forward(spc, emb, kparams)
    codes = [jax.block_until_ready(c) for c in codes]

    # sanity check against pure-JAX reference
    ref_codes = encoder_ref(spc, emb, raw)
    assert len(codes) == T // CFG.freq
    for c, r in zip(codes, ref_codes):
        assert c.shape == (B, 2 * CFG.dim_neck), c.shape
        max_diff = float(jnp.max(jnp.abs(c - r)))
        assert max_diff < 5e-2, f"mismatch vs reference: {max_diff}"

    print("KERNEL_OK")
</pallas_src>

<mosaic_0001>
module attributes {stable_mosaic.version = 11 : i64} {
  func.func @_conv_bn_relu_kernel(%arg0: i32, %arg1: memref<1x12x128xbf16, #tpu.memory_space<vmem>>, %arg2: memref<640x512xbf16, #tpu.memory_space<vmem>>, %arg3: memref<1x512xf32, #tpu.memory_space<vmem>>, %arg4: memref<1x512xf32, #tpu.memory_space<vmem>>, %arg5: memref<1x8x512xbf16, #tpu.memory_space<vmem>>) attributes {dimension_semantics = [#tpu.dimension_semantics<parallel>], iteration_bounds = array<i64: 2>, scalar_prefetch = 0 : i64, scratch_operands = 0 : i64, tpu.core_type = #tpu.core_type<tc>, window_params = [{transform_indices = @transform_0, window_bounds = array<i64: 1, 12, 128>}, {pipeline_mode = #tpu.pipeline_mode<synchronous>, transform_indices = @transform_1, window_bounds = array<i64: 640, 512>}, {pipeline_mode = #tpu.pipeline_mode<synchronous>, transform_indices = @transform_2, window_bounds = array<i64: 1, 512>}, {pipeline_mode = #tpu.pipeline_mode<synchronous>, transform_indices = @transform_3, window_bounds = array<i64: 1, 512>}, {transform_indices = @transform_4, window_bounds = array<i64: 1, 8, 512>}]} {
    %c0 = arith.constant 0 : index
    %c0_0 = arith.constant 0 : index
    %c0_1 = arith.constant 0 : index
    %0 = vector.load %arg1[%c0, %c0_0, %c0_1] : memref<1x12x128xbf16, #tpu.memory_space<vmem>>, vector<1x8x128xbf16>
    %1 = vector.shape_cast %0 : vector<1x8x128xbf16> to vector<8x128xbf16>
    %c0_2 = arith.constant 0 : index
    %c1 = arith.constant 1 : index
    %c0_3 = arith.constant 0 : index
    %2 = vector.load %arg1[%c0_2, %c1, %c0_3] : memref<1x12x128xbf16, #tpu.memory_space<vmem>>, vector<1x8x128xbf16>
    %3 = vector.shape_cast %2 : vector<1x8x128xbf16> to vector<8x128xbf16>
    %c0_4 = arith.constant 0 : index
    %c2 = arith.constant 2 : index
    %c0_5 = arith.constant 0 : index
    %4 = vector.load %arg1[%c0_4, %c2, %c0_5] : memref<1x12x128xbf16, #tpu.memory_space<vmem>>, vector<1x8x128xbf16>
    %5 = vector.shape_cast %4 : vector<1x8x128xbf16> to vector<8x128xbf16>
    %c0_6 = arith.constant 0 : index
    %c3 = arith.constant 3 : index
    %c0_7 = arith.constant 0 : index
    %6 = vector.load %arg1[%c0_6, %c3, %c0_7] : memref<1x12x128xbf16, #tpu.memory_space<vmem>>, vector<1x8x128xbf16>
    %7 = vector.shape_cast %6 : vector<1x8x128xbf16> to vector<8x128xbf16>
    %c0_8 = arith.constant 0 : index
    %c4 = arith.constant 4 : index
    %c0_9 = arith.constant 0 : index
    %8 = vector.load %arg1[%c0_8, %c4, %c0_9] : memref<1x12x128xbf16, #tpu.memory_space<vmem>>, vector<1x8x128xbf16>
    %9 = vector.shape_cast %8 : vector<1x8x128xbf16> to vector<8x128xbf16>
    %10 = tpu.concatenate %1, %3, %5, %7, %9 in 1 : vector<8x128xbf16>, vector<8x128xbf16>, vector<8x128xbf16>, vector<8x128xbf16>, vector<8x128xbf16> -> vector<8x640xbf16>
    %c0_10 = arith.constant 0 : index
    %c0_11 = arith.constant 0 : index
    %11 = vector.load %arg2[%c0_10, %c0_11] : memref<640x512xbf16, #tpu.memory_space<vmem>>, vector<640x512xbf16>
    %cst = arith.constant dense<0.000000e+00> : vector<8x512xf32>
    %12 = tpu.matmul %10, %11, %cst {dimension_numbers = #tpu.dot_dimension_numbers<[1], [0], [0], [1], [0, 0, 1, 1], [], []>} : vector<8x640xbf16>, vector<640x512xbf16>, vector<8x512xf32> -> vector<8x512xf32>
    %c0_12 = arith.constant 0 : index
    %c0_13 = arith.constant 0 : index
    %13 = vector.load %arg3[%c0_12, %c0_13] : memref<1x512xf32, #tpu.memory_space<vmem>>, vector<1x512xf32>
    %14 = vector.broadcast %13 : vector<1x512xf32> to vector<8x512xf32>
    %15 = arith.mulf %12, %14 : vector<8x512xf32>
    %c0_14 = arith.constant 0 : index
    %c0_15 = arith.constant 0 : index
    %16 = vector.load %arg4[%c0_14, %c0_15] : memref<1x512xf32, #tpu.memory_space<vmem>>, vector<1x512xf32>
    %17 = vector.broadcast %16 : vector<1x512xf32> to vector<8x512xf32>
    %18 = arith.addf %15, %17 : vector<8x512xf32>
    %cst_16 = arith.constant 0.000000e+00 : f32
    %19 = vector.broadcast %cst_16 : f32 to vector<8x512xf32>
    %20 = arith.maximumf %18, %19 : vector<8x512xf32>
    %21 = arith.truncf %20 : vector<8x512xf32> to vector<8x512xbf16>
    %c0_17 = arith.constant 0 : index
    %c0_18 = arith.constant 0 : index
    %c0_19 = arith.constant 0 : index
    %22 = vector.load %arg5[%c0_17, %c0_18, %c0_19] : memref<1x8x512xbf16, #tpu.memory_space<vmem>>, vector<1x8x512xbf16>
    %23 = vector.shape_cast %22 : vector<1x8x512xbf16> to vector<8x512xbf16>
    %24 = vector.shape_cast %21 : vector<8x512xbf16> to vector<1x8x512xbf16>
    tpu.vector_store %arg5[%c0_17, %c0_18, %c0_19], %24 {strides = array<i32>} : memref<1x8x512xbf16, #tpu.memory_space<vmem>>, vector<1x8x512xbf16>,
    return
  }
  func.func @transform_0(%arg0: i32) -> (i32, i32, i32) {
    %c0_i32 = arith.constant 0 : i32
    %c0_i32_0 = arith.constant 0 : i32
    %c0_i32_1 = arith.constant 0 : i32
    return %arg0, %c0_i32, %c0_i32_0 : i32, i32, i32
  }
  func.func @transform_1(%arg0: i32) -> (i32, i32) {
    %c0_i32 = arith.constant 0 : i32
    %c0_i32_0 = arith.constant 0 : i32
    %c0_i32_1 = arith.constant 0 : i32
    return %c0_i32, %c0_i32_0 : i32, i32
  }
  func.func @transform_2(%arg0: i32) -> (i32, i32) {
    %c0_i32 = arith.constant 0 : i32
    %c0_i32_0 = arith.constant 0 : i32
    %c0_i32_1 = arith.constant 0 : i32
    return %c0_i32, %c0_i32_0 : i32, i32
  }
  func.func @transform_3(%arg0: i32) -> (i32, i32) {
    %c0_i32 = arith.constant 0 : i32
    %c0_i32_0 = arith.constant 0 : i32
    %c0_i32_1 = arith.constant 0 : i32
    return %c0_i32, %c0_i32_0 : i32, i32
  }
  func.func @transform_4(%arg0: i32) -> (i32, i32, i32) {
    %c0_i32 = arith.constant 0 : i32
    %c0_i32_0 = arith.constant 0 : i32
    %c0_i32_1 = arith.constant 0 : i32
    return %arg0, %c0_i32, %c0_i32_0 : i32, i32, i32
  }
}

</mosaic_0001>

<llo_original>
// kernel: tpu_custom_call.1
$region0: #{tpu_custom_call.1}
  #allocation0 [shape = 'u32[]', space=smem, size = 0x4, offset = 0x4, fixed_abs, tag = 'smem constant byte address 0x4 - core index']
  #allocation1 [shape = 'u32[144,128]{1,0:T(1,128)}', space=vmem, size = 0x12000, scoped, tag = 'internal scratch']
  %s0 = inlined_call_operand.vmem [shape: bf16[2,12,128], index: 0, kind: input, shape index: {}]
  %s1 = inlined_call_operand.hbm [shape: bf16[640,512], index: 1, kind: input, shape index: {}]
  %s2 = inlined_call_operand.vmem [shape: f32[1,512], index: 2, kind: input, shape index: {}]
  %s3 = inlined_call_operand.vmem [shape: f32[1,512], index: 3, kind: input, shape index: {}]
  %s4 = inlined_call_operand.hbm [shape: bf16[2,8,512], index: 4, kind: output, shape index: {}]
  %s5 = sld [smem:[#allocation0]]
  $region53: #{tpu_custom_call.1} parent=0
    _
  %s7 = ssub.s32 1, %s5
  %s8 = scalar_select 0, %s7, %s5
  $region1: #{tpu_custom_call.1} parent=0
    #allocation2 [shape = 'u8[655360]{0}', space=vmem, size = 0xa0000, scoped, tag = 'input window, operand 1, single buffered']
    #allocation3 [shape = 's32[2]{0}', space=sflag, size = 0x8, scoped, tag = 'scoped memory for tpu_custom_call.1']
    #allocation4 [shape = 's32[2]{0}', space=sflag, size = 0x8, scoped, tag = 'scoped memory for tpu_custom_call.1']
    #allocation5 [shape = 'u8[16384]{0}', space=vmem, size = 0x4000, scoped, tag = 'output window, operand 0']
    %9 = vsyncpa [#allocation3], 0
    %10 = vsyncpa [#allocation4], 0
    %s11 = scalar_lea.sflag [#allocation4], 1
    %12 = vsyncpa %s11, 0
    loop: start=0, step=1, limit=4
    $region2: #{tpu_custom_call.1} parent=1 // loop_pre_header
      _
    $region3: #{tpu_custom_call.1} parent=1 // loop_header
      %s14 = sphi 0, %s18
      %p15 = scmp.ge.s32.totalorder %s14, 4
      %s24 = sphi 0, %s26
      %s27 = sphi 0, %s24
      %s28 = sphi 0, %s27
      %s44 = sphi 0, %s28
      %s48 = sphi 0, %s48
      %s50 = sphi 0, %s48
      %s51 = sphi 0, %s50
      %s65 = sphi 0, %s51
      %s69 = sphi 0, %s69
      %s71 = sphi 0, %s69
      %s72 = sphi 0, %s71
      %s86 = sphi 0, %s72
      %s90 = sphi 0, %s90
      %s92 = sphi 0, %s90
      %s93 = sphi 0, %s92
      %s107 = sphi 0, %s93
      %s113 = sphi 0, %s115
      %s116 = sphi 0, %s113
      %s117 = sphi 0, %s116
      %s133 = sphi 0, %s117
    $region4: #{tpu_custom_call.1} parent=1 // loop_header_branch
      %17 = sbr.rel (%p15) target = $region8
    $region5: #{tpu_custom_call.1} parent=1 // loop_body
      %s19 = ssub.s32 %s14, 1
      %s20 = ssub.s32 %s14, 2
      %s21 = sadd.s32 %s14, 1
      %s22 = ssub.s32 %s14, %s21
      %p23 = scmp.eq.s32.totalorder %s22, 0
      %s25 = sadd.s32 %s24, 1
      %s26 = scalar_select %p23, %s24, %s25
      %p29 = pneg %p23
      %p30 = scmp.eq.s32.totalorder %s14, 1
      %p31 = por %p29, %p30
      %p32 = scmp.ne.s32.totalorder %s24, %s27
      %p33 = scmp.eq.s32.totalorder %s14, 0
      %p34 = por %p32, %p33
      %p35 = scmp.ne.s32.totalorder %s24, %s27
      %p36 = scmp.eq.s32.totalorder %s19, 1
      %p37 = por %p35, %p36
      %p38 = scmp.ne.s32.totalorder %s27, %s28
      %p39 = scmp.eq.s32.totalorder %s19, 0
      %p40 = por %p38, %p39
      %p41 = scmp.ne.s32.totalorder %s27, %s28
      %p42 = scmp.eq.s32.totalorder %s20, 1
      %p43 = por %p41, %p42
      %p45 = scmp.ne.s32.totalorder %s28, %s44
      %p46 = scmp.eq.s32.totalorder %s20, 0
      %p47 = por %p45, %p46
      %s49 = sadd.s32 %s48, 1
      %p52 = scmp.eq.s32.totalorder %s14, 1
      %p53 = scmp.ne.s32.totalorder %s48, %s50
      %p54 = scmp.eq.s32.totalorder %s14, 0
      %p55 = por %p53, %p54
      %p56 = scmp.ne.s32.totalorder %s48, %s50
      %p57 = scmp.eq.s32.totalorder %s19, 1
      %p58 = por %p56, %p57
      %p59 = scmp.ne.s32.totalorder %s50, %s51
      %p60 = scmp.eq.s32.totalorder %s19, 0
      %p61 = por %p59, %p60
      %p62 = scmp.ne.s32.totalorder %s50, %s51
      %p63 = scmp.eq.s32.totalorder %s20, 1
      %p64 = por %p62, %p63
      %p66 = scmp.ne.s32.totalorder %s51, %s65
      %p67 = scmp.eq.s32.totalorder %s20, 0
      %p68 = por %p66, %p67
      %s70 = sadd.s32 %s69, 1
      %p73 = scmp.eq.s32.totalorder %s14, 1
      %p74 = scmp.ne.s32.totalorder %s69, %s71
      %p75 = scmp.eq.s32.totalorder %s14, 0
      %p76 = por %p74, %p75
      %p77 = scmp.ne.s32.totalorder %s69, %s71
      %p78 = scmp.eq.s32.totalorder %s19, 1
      %p79 = por %p77, %p78
      %p80 = scmp.ne.s32.totalorder %s71, %s72
      %p81 = scmp.eq.s32.totalorder %s19, 0
      %p82 = por %p80, %p81
      %p83 = scmp.ne.s32.totalorder %s71, %s72
      %p84 = scmp.eq.s32.totalorder %s20, 1
      %p85 = por %p83, %p84
      %p87 = scmp.ne.s32.totalorder %s72, %s86
      %p88 = scmp.eq.s32.totalorder %s20, 0
      %p89 = por %p87, %p88
      %s91 = sadd.s32 %s90, 1
      %p94 = scmp.eq.s32.totalorder %s14, 1
      %p95 = scmp.ne.s32.totalorder %s90, %s92
      %p96 = scmp.eq.s32.totalorder %s14, 0
      %p97 = por %p95, %p96
      %p98 = scmp.ne.s32.totalorder %s90, %s92
      %p99 = scmp.eq.s32.totalorder %s19, 1
      %p100 = por %p98, %p99
      %p101 = scmp.ne.s32.totalorder %s92, %s93
      %p102 = scmp.eq.s32.totalorder %s19, 0
      %p103 = por %p101, %p102
      %p104 = scmp.ne.s32.totalorder %s92, %s93
      %p105 = scmp.eq.s32.totalorder %s20, 1
      %p106 = por %p104, %p105
      %p108 = scmp.ne.s32.totalorder %s93, %s107
      %p109 = scmp.eq.s32.totalorder %s20, 0
      %p110 = por %p108, %p109
      %s111 = ssub.s32 %s14, %s21
      %p112 = scmp.eq.s32.totalorder %s111, 0
      %s114 = sadd.s32 %s113, 1
      %s115 = scalar_select %p112, %s113, %s114
      %p118 = pneg %p112
      %p119 = scmp.eq.s32.totalorder %s14, 1
      %p120 = por %p118, %p119
      %p121 = scmp.ne.s32.totalorder %s113, %s116
      %p122 = scmp.eq.s32.totalorder %s14, 0
      %p123 = por %p121, %p122
      %p124 = scmp.ne.s32.totalorder %s113, %s116
      %p125 = scmp.eq.s32.totalorder %s19, 1
      %p126 = por %p124, %p125
      %p127 = scmp.ne.s32.totalorder %s116, %s117
      %p128 = scmp.eq.s32.totalorder %s19, 0
      %p129 = por %p127, %p128
      %p130 = scmp.ne.s32.totalorder %s116, %s117
      %p131 = scmp.eq.s32.totalorder %s20, 1
      %p132 = por %p130, %p131
      %p134 = scmp.ne.s32.totalorder %s117, %s133
      %p135 = scmp.eq.s32.totalorder %s20, 0
      %p136 = por %p134, %p135
      %p137 = scmp.le.s32.totalorder 1, %s14
      %p138 = scmp.lt.s32.totalorder %s14, 3
      %p139 = pnand %p137, %p138
      %p140 = pneg %p139
      // Predicated region
      $region9: #{tpu_custom_call.1} parent=5 // pred_check
        _
      $region10: #{tpu_custom_call.1} parent=5 // pred_check_branch
        %142 = sbr.rel (%p139) target = $region12
      $region11: #{tpu_custom_call.1} parent=5 // pred_region
        %s143 = ssub.s32 %s14, 1
        // Predicated region
        $region13: #{tpu_custom_call.1} parent=11 // pred_check
          %p144 = pneg %p61
        $region14: #{tpu_custom_call.1} parent=11 // pred_check_branch
          %146 = sbr.rel (%p144) target = $region16
        $region15: #{tpu_custom_call.1} parent=11 // pred_region
          %s148 = ssub.s32 20480, 20480
          %149 = vsyncadd [#allocation3], %s148
          %s150 = sshll.u32 [#allocation2], 4
          %s151 = int_to_ptr.vmem [resolvable:$true] %s150
          %156 = dma.hbm_to_vmem [thread:$0]  %s1, 20480, %s151, [#allocation3], 256, 256, 16
        $region16: #{tpu_custom_call.1} parent=11 // pred_fallthru
          _
        // Predicated region
        $region17: #{tpu_custom_call.1} parent=11 // pred_check
          %p157 = pneg %p82
        $region18: #{tpu_custom_call.1} parent=11 // pred_check_branch
          %159 = sbr.rel (%p157) target = $region20
        $region19: #{tpu_custom_call.1} parent=11 // pred_region
          _
        $region20: #{tpu_custom_call.1} parent=11 // pred_fallthru
          _
        // Predicated region
        $region21: #{tpu_custom_call.1} parent=11 // pred_check
          %p160 = pneg %p103
        $region22: #{tpu_custom_call.1} parent=11 // pred_check_branch
          %162 = sbr.rel (%p160) target = $region24
        $region23: #{tpu_custom_call.1} parent=11 // pred_region
          _
        $region24: #{tpu_custom_call.1} parent=11 // pred_fallthru
          _
      $region12: #{tpu_custom_call.1} parent=5 // pred_fallthru
        _
      %p163 = scmp.lt.s32.totalorder %s14, 2
      // Predicated region
      $region25: #{tpu_custom_call.1} parent=5 // pred_check
        %p164 = pneg %p163
      $region26: #{tpu_custom_call.1} parent=5 // pred_check_branch
        %166 = sbr.rel (%p164) target = $region28
      $region27: #{tpu_custom_call.1} parent=5 // pred_region
        // Predicated region
        $region29: #{tpu_custom_call.1} parent=27 // pred_check
          %p167 = pneg %p34
        $region30: #{tpu_custom_call.1} parent=27 // pred_check_branch
          %169 = sbr.rel (%p167) target = $region32
        $region31: #{tpu_custom_call.1} parent=27 // pred_region
          %p170 = scmp.lt.s32.totalorder %s14, 1
          %s171 = scalar_select %p170, %s14, 1
          %s172 = smul.addr %s171, 2
          %s173 = smul.addr %s172, 4
          %s174 = scalar_lea.vmem %s0, %s173
        $region32: #{tpu_custom_call.1} parent=27 // pred_fallthru
          _
      $region28: #{tpu_custom_call.1} parent=5 // pred_fallthru
        _
      %p175 = scmp.le.s32.totalorder 1, %s14
      %p176 = scmp.lt.s32.totalorder %s14, 3
      %p177 = pnand %p175, %p176
      %p178 = pneg %p177
      // Predicated region
      $region33: #{tpu_custom_call.1} parent=5 // pred_check
        _
      $region34: #{tpu_custom_call.1} parent=5 // pred_check_branch
        %180 = sbr.rel (%p177) target = $region36
      $region35: #{tpu_custom_call.1} parent=5 // pred_region
        %s181 = ssub.s32 %s14, 1
        // Predicated region
        $region37: #{tpu_custom_call.1} parent=35 // pred_check
          %p182 = pneg %p61
        $region38: #{tpu_custom_call.1} parent=35 // pred_check_branch
          %184 = sbr.rel (%p182) target = $region40
        $region39: #{tpu_custom_call.1} parent=35 // pred_region
          %185 = dma.done [#allocation3], 20480
        $region40: #{tpu_custom_call.1} parent=35 // pred_fallthru
          _
        %p186 = scmp.lt.s32.totalorder %s19, 1
        %s187 = scalar_select %p186, %s19, 1
        %s188 = smul.addr %s187, 2
        %s189 = smul.addr %s188, 4
        %s190 = scalar_lea.vmem %s0, %s189
        %p191 = pneg %p40
        %p192 = pneg %p37
        %p193 = pneg %p61
        %p194 = pneg %p58
        %p195 = pneg %p82
        %p196 = pneg %p79
        %p197 = pneg %p103
        %p198 = pneg %p100
        %p199 = pneg %p129
        %p200 = pneg %p126
        %s201 = sand.u32 %s116, 1
        %s202 = scalar_lea.sflag [#allocation4], %s201
        %s203 = sand.u32 %s116, 1
        %s204 = smul.addr %s203, 16
        %s205 = scalar_lea.vmem [#allocation5], %s204
        %p206 = scmp.lt.s32.totalorder %s19, 1
        %s207 = scalar_select %p206, %s19, 1
        %s208 = smul.addr %s207, 2
        %s209 = smul.addr %s208, 4
        %s210 = scalar_lea.vmem %s0, %s209
        %v212 = vld [vmem:[%s210] sm:$0xf]
        %v213 = vld [vmem:[%s210 + $0x4] sm:$0x1]
        %v214 = vld [vmem:[%s210] sm:$0xe]
        %v215 = vld [vmem:[%s210 + $0x4] sm:$0x3]
        %v216 = vld [vmem:[%s210] sm:$0xc]
        %v219 = vunpack.c.l.b16 %v212
        %v220 = vunpack.c.l.b16 %v213
        %v221 = vpack.c.b16 %v220, %v219
        %v223 = vshrl.u32 %v221, 16
        %v225 = vshll.u32 %v221, 16
        %v227 = vrot.slane %v225, 1
        %v228 = vor.u32 %v223, %v227
        %v231 = vunpack.c.l.b16 %v214
        %v232 = vpack.c.b16 %v220, %v231
        %v233 = vrot.slane %v232, 1
        %v236 = vunpack.c.l.b16 %v215
        %v237 = vpack.c.b16 %v236, %v231
        %v239 = vshrl.u32 %v237, 16
        %v241 = vrot.slane %v239, 1
        %v242 = vshll.u32 %v237, 16
        %v244 = vrot.slane %v242, 2
        %v245 = vor.u32 %v241, %v244
        %v248 = vunpack.c.l.b16 %v216
        %v249 = vpack.c.b16 %v236, %v248
        %v250 = vrot.slane %v249, 2
        %v252 = vld [vmem:[#allocation2] sm:$0xff]
        %v253 = vld [vmem:[#allocation2 + $0x8] sm:$0xff]
        %v254 = vld [vmem:[#allocation2 + $0x10] sm:$0xff]
        %v255 = vld [vmem:[#allocation2 + $0x18] sm:$0xff]
        %v256 = vld [vmem:[#allocation2 + $0x20] sm:$0xff]
        %v257 = vld [vmem:[#allocation2 + $0x28] sm:$0xff]
        %v258 = vld [vmem:[#allocation2 + $0x30] sm:$0xff]
        %v259 = vld [vmem:[#allocation2 + $0x38] sm:$0xff]
        %v260 = vld [vmem:[#allocation2 + $0x40] sm:$0xff]
        %v261 = vld [vmem:[#allocation2 + $0x48] sm:$0xff]
        %v262 = vld [vmem:[#allocation2 + $0x50] sm:$0xff]
        %v263 = vld [vmem:[#allocation2 + $0x58] sm:$0xff]
        %v264 = vld [vmem:[#allocation2 + $0x60] sm:$0xff]
        %v265 = vld [vmem:[#allocation2 + $0x68] sm:$0xff]
        %v266 = vld [vmem:[#allocation2 + $0x70] sm:$0xff]
        %v267 = vld [vmem:[#allocation2 + $0x78] sm:$0xff]
        %v268 = vld [vmem:[#allocation2 + $0x80] sm:$0xff]
        %v269 = vld [vmem:[#allocation2 + $0x88] sm:$0xff]
        %v270 = vld [vmem:[#allocation2 + $0x90] sm:$0xff]
        %v271 = vld [vmem:[#allocation2 + $0x98] sm:$0xff]
        %v272 = vld [vmem:[#allocation2 + $0xa0] sm:$0xff]
        %v273 = vld [vmem:[#allocation2 + $0xa8] sm:$0xff]
        %v274 = vld [vmem:[#allocation2 + $0xb0] sm:$0xff]
        %v275 = vld [vmem:[#allocation2 + $0xb8] sm:$0xff]
        %v276 = vld [vmem:[#allocation2 + $0xc0] sm:$0xff]
        %v277 = vld [vmem:[#allocation2 + $0xc8] sm:$0xff]
        %v278 = vld [vmem:[#allocation2 + $0xd0] sm:$0xff]
        %v279 = vld [vmem:[#allocation2 + $0xd8] sm:$0xff]
        %v280 = vld [vmem:[#allocation2 + $0xe0] sm:$0xff]
        %v281 = vld [vmem:[#allocation2 + $0xe8] sm:$0xff]
        %v282 = vld [vmem:[#allocation2 + $0xf0] sm:$0xff]
        %v283 = vld [vmem:[#allocation2 + $0xf8] sm:$0xff]
        %v284 = vld [vmem:[#allocation2 + $0x100] sm:$0xff]
        %v285 = vld [vmem:[#allocation2 + $0x108] sm:$0xff]
        %v286 = vld [vmem:[#allocation2 + $0x110] sm:$0xff]
        %v287 = vld [vmem:[#allocation2 + $0x118] sm:$0xff]
        %v288 = vld [vmem:[#allocation2 + $0x120] sm:$0xff]
        %v289 = vld [vmem:[#allocation2 + $0x128] sm:$0xff]
        %v290 = vld [vmem:[#allocation2 + $0x130] sm:$0xff]
        %v291 = vld [vmem:[#allocation2 + $0x138] sm:$0xff]
        %v292 = vld [vmem:[#allocation2 + $0x140] sm:$0xff]
        %v293 = vld [vmem:[#allocation2 + $0x148] sm:$0xff]
        %v294 = vld [vmem:[#allocation2 + $0x150] sm:$0xff]
        %v295 = vld [vmem:[#allocation2 + $0x158] sm:$0xff]
        %v296 = vld [vmem:[#allocation2 + $0x160] sm:$0xff]
        %v297 = vld [vmem:[#allocation2 + $0x168] sm:$0xff]
        %v298 = vld [vmem:[#allocation2 + $0x170] sm:$0xff]
        %v299 = vld [vmem:[#allocation2 + $0x178] sm:$0xff]
        %v300 = vld [vmem:[#allocation2 + $0x180] sm:$0xff]
        %v301 = vld [vmem:[#allocation2 + $0x188] sm:$0xff]
        %v302 = vld [vmem:[#allocation2 + $0x190] sm:$0xff]
        %v303 = vld [vmem:[#allocation2 + $0x198] sm:$0xff]
        %v304 = vld [vmem:[#allocation2 + $0x1a0] sm:$0xff]
        %v305 = vld [vmem:[#allocation2 + $0x1a8] sm:$0xff]
        %v306 = vld [vmem:[#allocation2 + $0x1b0] sm:$0xff]
        %v307 = vld [vmem:[#allocation2 + $0x1b8] sm:$0xff]
        %v308 = vld [vmem:[#allocation2 + $0x1c0] sm:$0xff]
        %v309 = vld [vmem:[#allocation2 + $0x1c8] sm:$0xff]
        %v310 = vld [vmem:[#allocation2 + $0x1d0] sm:$0xff]
        %v311 = vld [vmem:[#allocation2 + $0x1d8] sm:$0xff]
        %v312 = vld [vmem:[#allocation2 + $0x1e0] sm:$0xff]
        %v313 = vld [vmem:[#allocation2 + $0x1e8] sm:$0xff]
        %v314 = vld [vmem:[#allocation2 + $0x1f0] sm:$0xff]
        %v315 = vld [vmem:[#allocation2 + $0x1f8] sm:$0xff]
        %v316 = vld [vmem:[#allocation2 + $0x200] sm:$0xff]
        %v317 = vld [vmem:[#allocation2 + $0x208] sm:$0xff]
        %v318 = vld [vmem:[#allocation2 + $0x210] sm:$0xff]
        %v319 = vld [vmem:[#allocation2 + $0x218] sm:$0xff]
        %v320 = vld [vmem:[#allocation2 + $0x220] sm:$0xff]
        %v321 = vld [vmem:[#allocation2 + $0x228] sm:$0xff]
        %v322 = vld [vmem:[#allocation2 + $0x230] sm:$0xff]
        %v323 = vld [vmem:[#allocation2 + $0x238] sm:$0xff]
        %v324 = vld [vmem:[#allocation2 + $0x240] sm:$0xff]
        %v325 = vld [vmem:[#allocation2 + $0x248] sm:$0xff]
        %v326 = vld [vmem:[#allocation2 + $0x250] sm:$0xff]
        %v327 = vld [vmem:[#allocation2 + $0x258] sm:$0xff]
        %v328 = vld [vmem:[#allocation2 + $0x260] sm:$0xff]
        %v329 = vld [vmem:[#allocation2 + $0x268] sm:$0xff]
        %v330 = vld [vmem:[#allocation2 + $0x270] sm:$0xff]
        %v331 = vld [vmem:[#allocation2 + $0x278] sm:$0xff]
        %v332 = vld [vmem:[#allocation2 + $0x280] sm:$0xff]
        %v333 = vld [vmem:[#allocation2 + $0x288] sm:$0xff]
        %v334 = vld [vmem:[#allocation2 + $0x290] sm:$0xff]
        %v335 = vld [vmem:[#allocation2 + $0x298] sm:$0xff]
        %v336 = vld [vmem:[#allocation2 + $0x2a0] sm:$0xff]
        %v337 = vld [vmem:[#allocation2 + $0x2a8] sm:$0xff]
        %v338 = vld [vmem:[#allocation2 + $0x2b0] sm:$0xff]
        %v339 = vld [vmem:[#allocation2 + $0x2b8] sm:$0xff]
        %v340 = vld [vmem:[#allocation2 + $0x2c0] sm:$0xff]
        %v341 = vld [vmem:[#allocation2 + $0x2c8] sm:$0xff]
        %v342 = vld [vmem:[#allocation2 + $0x2d0] sm:$0xff]
        %v343 = vld [vmem:[#allocation2 + $0x2d8] sm:$0xff]
        %v344 = vld [vmem:[#allocation2 + $0x2e0] sm:$0xff]
        %v345 = vld [vmem:[#allocation2 + $0x2e8] sm:$0xff]
        %v346 = vld [vmem:[#allocation2 + $0x2f0] sm:$0xff]
        %v347 = vld [vmem:[#allocation2 + $0x2f8] sm:$0xff]
        %v348 = vld [vmem:[#allocation2 + $0x300] sm:$0xff]
        %v349 = vld [vmem:[#allocation2 + $0x308] sm:$0xff]
        %v350 = vld [vmem:[#allocation2 + $0x310] sm:$0xff]
        %v351 = vld [vmem:[#allocation2 + $0x318] sm:$0xff]
        %v352 = vld [vmem:[#allocation2 + $0x320] sm:$0xff]
        %v353 = vld [vmem:[#allocation2 + $0x328] sm:$0xff]
        %v354 = vld [vmem:[#allocation2 + $0x330] sm:$0xff]
        %v355 = vld [vmem:[#allocation2 + $0x338] sm:$0xff]
        %v356 = vld [vmem:[#allocation2 + $0x340] sm:$0xff]
        %v357 = vld [vmem:[#allocation2 + $0x348] sm:$0xff]
        %v358 = vld [vmem:[#allocation2 + $0x350] sm:$0xff]
        %v359 = vld [vmem:[#allocation2 + $0x358] sm:$0xff]
        %v360 = vld [vmem:[#allocation2 + $0x360] sm:$0xff]
        %v361 = vld [vmem:[#allocation2 + $0x368] sm:$0xff]
        %v362 = vld [vmem:[#allocation2 + $0x370] sm:$0xff]
        %v363 = vld [vmem:[#allocation2 + $0x378] sm:$0xff]
        %v364 = vld [vmem:[#allocation2 + $0x380] sm:$0xff]
        %v365 = vld [vmem:[#allocation2 + $0x388] sm:$0xff]
        %v366 = vld [vmem:[#allocation2 + $0x390] sm:$0xff]
        %v367 = vld [vmem:[#allocation2 + $0x398] sm:$0xff]
        %v368 = vld [vmem:[#allocation2 + $0x3a0] sm:$0xff]
        %v369 = vld [vmem:[#allocation2 + $0x3a8] sm:$0xff]
        %v370 = vld [vmem:[#allocation2 + $0x3b0] sm:$0xff]
        %v371 = vld [vmem:[#allocation2 + $0x3b8] sm:$0xff]
        %v372 = vld [vmem:[#allocation2 + $0x3c0] sm:$0xff]
        %v373 = vld [vmem:[#allocation2 + $0x3c8] sm:$0xff]
        %v374 = vld [vmem:[#allocation2 + $0x3d0] sm:$0xff]
        %v375 = vld [vmem:[#allocation2 + $0x3d8] sm:$0xff]
        %v376 = vld [vmem:[#allocation2 + $0x3e0] sm:$0xff]
        %v377 = vld [vmem:[#allocation2 + $0x3e8] sm:$0xff]
        %v378 = vld [vmem:[#allocation2 + $0x3f0] sm:$0xff]
        %v379 = vld [vmem:[#allocation2 + $0x3f8] sm:$0xff]
        %v380 = vld [vmem:[#allocation2 + $0x400] sm:$0xff]
        %v381 = vld [vmem:[#allocation2 + $0x408] sm:$0xff]
        %v382 = vld [vmem:[#allocation2 + $0x410] sm:$0xff]
        %v383 = vld [vmem:[#allocation2 + $0x418] sm:$0xff]
        %v384 = vld [vmem:[#allocation2 + $0x420] sm:$0xff]
        %v385 = vld [vmem:[#allocation2 + $0x428] sm:$0xff]
        %v386 = vld [vmem:[#allocation2 + $0x430] sm:$0xff]
        %v387 = vld [vmem:[#allocation2 + $0x438] sm:$0xff]
        %v388 = vld [vmem:[#allocation2 + $0x440] sm:$0xff]
        %v389 = vld [vmem:[#allocation2 + $0x448] sm:$0xff]
        %v390 = vld [vmem:[#allocation2 + $0x450] sm:$0xff]
        %v391 = vld [vmem:[#allocation2 + $0x458] sm:$0xff]
        %v392 = vld [vmem:[#allocation2 + $0x460] sm:$0xff]
        %v393 = vld [vmem:[#allocation2 + $0x468] sm:$0xff]
        %v394 = vld [vmem:[#allocation2 + $0x470] sm:$0xff]
        %v395 = vld [vmem:[#allocation2 + $0x478] sm:$0xff]
        %v396 = vld [vmem:[#allocation2 + $0x480] sm:$0xff]
        %v397 = vld [vmem:[#allocation2 + $0x488] sm:$0xff]
        %v398 = vld [vmem:[#allocation2 + $0x490] sm:$0xff]
        %v399 = vld [vmem:[#allocation2 + $0x498] sm:$0xff]
        %v400 = vld [vmem:[#allocation2 + $0x4a0] sm:$0xff]
        %v401 = vld [vmem:[#allocation2 + $0x4a8] sm:$0xff]
        %v402 = vld [vmem:[#allocation2 + $0x4b0] sm:$0xff]
        %v403 = vld [vmem:[#allocation2 + $0x4b8] sm:$0xff]
        %v404 = vld [vmem:[#allocation2 + $0x4c0] sm:$0xff]
        %v405 = vld [vmem:[#allocation2 + $0x4c8] sm:$0xff]
        %v406 = vld [vmem:[#allocation2 + $0x4d0] sm:$0xff]
        %v407 = vld [vmem:[#allocation2 + $0x4d8] sm:$0xff]
        %v408 = vld [vmem:[#allocation2 + $0x4e0] sm:$0xff]
        %v409 = vld [vmem:[#allocation2 + $0x4e8] sm:$0xff]
        %v410 = vld [vmem:[#allocation2 + $0x4f0] sm:$0xff]
        %v411 = vld [vmem:[#allocation2 + $0x4f8] sm:$0xff]
        %v572 = vunpack.c.l.b16 %v252
        %v573 = vunpack.c.h.b16 %v252
        %v574 = vunpack.c.l.b16 %v253
        %v575 = vunpack.c.h.b16 %v253
        %v576 = vunpack.c.l.b16 %v254
        %v577 = vunpack.c.h.b16 %v254
        %v578 = vunpack.c.l.b16 %v255
        %v579 = vunpack.c.h.b16 %v255
        %v580 = vunpack.c.l.b16 %v256
        %v581 = vunpack.c.h.b16 %v256
        %v582 = vunpack.c.l.b16 %v257
        %v583 = vunpack.c.h.b16 %v257
        %v584 = vunpack.c.l.b16 %v258
        %v585 = vunpack.c.h.b16 %v258
        %v586 = vunpack.c.l.b16 %v259
        %v587 = vunpack.c.h.b16 %v259
        %v588 = vunpack.c.l.b16 %v260
        %v589 = vunpack.c.h.b16 %v260
        %v590 = vunpack.c.l.b16 %v261
        %v591 = vunpack.c.h.b16 %v261
        %v592 = vunpack.c.l.b16 %v262
        %v593 = vunpack.c.h.b16 %v262
        %v594 = vunpack.c.l.b16 %v263
        %v595 = vunpack.c.h.b16 %v263
        %v596 = vunpack.c.l.b16 %v264
        %v597 = vunpack.c.h.b16 %v264
        %v598 = vunpack.c.l.b16 %v265
        %v599 = vunpack.c.h.b16 %v265
        %v600 = vunpack.c.l.b16 %v266
        %v601 = vunpack.c.h.b16 %v266
        %v602 = vunpack.c.l.b16 %v267
        %v603 = vunpack.c.h.b16 %v267
        %v604 = vunpack.c.l.b16 %v268
        %v605 = vunpack.c.h.b16 %v268
        %v606 = vunpack.c.l.b16 %v269
        %v607 = vunpack.c.h.b16 %v269
        %v608 = vunpack.c.l.b16 %v270
        %v609 = vunpack.c.h.b16 %v270
        %v610 = vunpack.c.l.b16 %v271
        %v611 = vunpack.c.h.b16 %v271
        %v612 = vunpack.c.l.b16 %v272
        %v613 = vunpack.c.h.b16 %v272
        %v614 = vunpack.c.l.b16 %v273
        %v615 = vunpack.c.h.b16 %v273
        %v616 = vunpack.c.l.b16 %v274
        %v617 = vunpack.c.h.b16 %v274
        %v618 = vunpack.c.l.b16 %v275
        %v619 = vunpack.c.h.b16 %v275
        %v620 = vunpack.c.l.b16 %v276
        %v621 = vunpack.c.h.b16 %v276
        %v622 = vunpack.c.l.b16 %v277
        %v623 = vunpack.c.h.b16 %v277
        %v624 = vunpack.c.l.b16 %v278
        %v625 = vunpack.c.h.b16 %v278
        %v626 = vunpack.c.l.b16 %v279
        %v627 = vunpack.c.h.b16 %v279
        %v628 = vunpack.c.l.b16 %v280
        %v629 = vunpack.c.h.b16 %v280
        %v630 = vunpack.c.l.b16 %v281
        %v631 = vunpack.c.h.b16 %v281
        %v632 = vunpack.c.l.b16 %v282
        %v633 = vunpack.c.h.b16 %v282
        %v634 = vunpack.c.l.b16 %v283
        %v635 = vunpack.c.h.b16 %v283
        %v636 = vunpack.c.l.b16 %v284
        %v637 = vunpack.c.h.b16 %v284
        %v638 = vunpack.c.l.b16 %v285
        %v639 = vunpack.c.h.b16 %v285
        %v640 = vunpack.c.l.b16 %v286
        %v641 = vunpack.c.h.b16 %v286
        %v642 = vunpack.c.l.b16 %v287
        %v643 = vunpack.c.h.b16 %v287
        %v644 = vunpack.c.l.b16 %v288
        %v645 = vunpack.c.h.b16 %v288
        %v646 = vunpack.c.l.b16 %v289
        %v647 = vunpack.c.h.b16 %v289
        %v648 = vunpack.c.l.b16 %v290
        %v649 = vunpack.c.h.b16 %v290
        %v650 = vunpack.c.l.b16 %v291
        %v651 = vunpack.c.h.b16 %v291
        %v652 = vunpack.c.l.b16 %v292
        %v653 = vunpack.c.h.b16 %v292
        %v654 = vunpack.c.l.b16 %v293
        %v655 = vunpack.c.h.b16 %v293
        %v656 = vunpack.c.l.b16 %v294
        %v657 = vunpack.c.h.b16 %v294
        %v658 = vunpack.c.l.b16 %v295
        %v659 = vunpack.c.h.b16 %v295
        %v660 = vunpack.c.l.b16 %v296
        %v661 = vunpack.c.h.b16 %v296
        %v662 = vunpack.c.l.b16 %v297
        %v663 = vunpack.c.h.b16 %v297
        %v664 = vunpack.c.l.b16 %v298
        %v665 = vunpack.c.h.b16 %v298
        %v666 = vunpack.c.l.b16 %v299
        %v667 = vunpack.c.h.b16 %v299
        %v668 = vunpack.c.l.b16 %v300
        %v669 = vunpack.c.h.b16 %v300
        %v670 = vunpack.c.l.b16 %v301
        %v671 = vunpack.c.h.b16 %v301
        %v672 = vunpack.c.l.b16 %v302
        %v673 = vunpack.c.h.b16 %v302
        %v674 = vunpack.c.l.b16 %v303
        %v675 = vunpack.c.h.b16 %v303
        %v676 = vunpack.c.l.b16 %v304
        %v677 = vunpack.c.h.b16 %v304
        %v678 = vunpack.c.l.b16 %v305
        %v679 = vunpack.c.h.b16 %v305
        %v680 = vunpack.c.l.b16 %v306
        %v681 = vunpack.c.h.b16 %v306
        %v682 = vunpack.c.l.b16 %v307
        %v683 = vunpack.c.h.b16 %v307
        %v684 = vunpack.c.l.b16 %v308
        %v685 = vunpack.c.h.b16 %v308
        %v686 = vunpack.c.l.b16 %v309
        %v687 = vunpack.c.h.b16 %v309
        %v688 = vunpack.c.l.b16 %v310
        %v689 = vunpack.c.h.b16 %v310
        %v690 = vunpack.c.l.b16 %v311
        %v691 = vunpack.c.h.b16 %v311
        %v692 = vunpack.c.l.b16 %v312
        %v693 = vunpack.c.h.b16 %v312
        %v694 = vunpack.c.l.b16 %v313
        %v695 = vunpack.c.h.b16 %v313
        %v696 = vunpack.c.l.b16 %v314
        %v697 = vunpack.c.h.b16 %v314
        %v698 = vunpack.c.l.b16 %v315
        %v699 = vunpack.c.h.b16 %v315
        %v700 = vunpack.c.l.b16 %v316
        %v701 = vunpack.c.h.b16 %v316
        %v702 = vunpack.c.l.b16 %v317
        %v703 = vunpack.c.h.b16 %v317
        %v704 = vunpack.c.l.b16 %v318
        %v705 = vunpack.c.h.b16 %v318
        %v706 = vunpack.c.l.b16 %v319
        %v707 = vunpack.c.h.b16 %v319
        %v708 = vunpack.c.l.b16 %v320
        %v709 = vunpack.c.h.b16 %v320
        %v710 = vunpack.c.l.b16 %v321
        %v711 = vunpack.c.h.b16 %v321
        %v712 = vunpack.c.l.b16 %v322
        %v713 = vunpack.c.h.b16 %v322
        %v714 = vunpack.c.l.b16 %v323
        %v715 = vunpack.c.h.b16 %v323
        %v716 = vunpack.c.l.b16 %v324
        %v717 = vunpack.c.h.b16 %v324
        %v718 = vunpack.c.l.b16 %v325
        %v719 = vunpack.c.h.b16 %v325
        %v720 = vunpack.c.l.b16 %v326
        %v721 = vunpack.c.h.b16 %v326
        %v722 = vunpack.c.l.b16 %v327
        %v723 = vunpack.c.h.b16 %v327
        %v724 = vunpack.c.l.b16 %v328
        %v725 = vunpack.c.h.b16 %v328
        %v726 = vunpack.c.l.b16 %v329
        %v727 = vunpack.c.h.b16 %v329
        %v728 = vunpack.c.l.b16 %v330
        %v729 = vunpack.c.h.b16 %v330
        %v730 = vunpack.c.l.b16 %v331
        %v731 = vunpack.c.h.b16 %v331
        %v732 = vunpack.c.l.b16 %v332
        %v733 = vunpack.c.h.b16 %v332
        %v734 = vunpack.c.l.b16 %v333
        %v735 = vunpack.c.h.b16 %v333
        %v736 = vunpack.c.l.b16 %v334
        %v737 = vunpack.c.h.b16 %v334
        %v738 = vunpack.c.l.b16 %v335
        %v739 = vunpack.c.h.b16 %v335
        %v740 = vunpack.c.l.b16 %v336
        %v741 = vunpack.c.h.b16 %v336
        %v742 = vunpack.c.l.b16 %v337
        %v743 = vunpack.c.h.b16 %v337
        %v744 = vunpack.c.l.b16 %v338
        %v745 = vunpack.c.h.b16 %v338
        %v746 = vunpack.c.l.b16 %v339
        %v747 = vunpack.c.h.b16 %v339
        %v748 = vunpack.c.l.b16 %v340
        %v749 = vunpack.c.h.b16 %v340
        %v750 = vunpack.c.l.b16 %v341
        %v751 = vunpack.c.h.b16 %v341
        %v752 = vunpack.c.l.b16 %v342
        %v753 = vunpack.c.h.b16 %v342
        %v754 = vunpack.c.l.b16 %v343
        %v755 = vunpack.c.h.b16 %v343
        %v756 = vunpack.c.l.b16 %v344
        %v757 = vunpack.c.h.b16 %v344
        %v758 = vunpack.c.l.b16 %v345
        %v759 = vunpack.c.h.b16 %v345
        %v760 = vunpack.c.l.b16 %v346
        %v761 = vunpack.c.h.b16 %v346
        %v762 = vunpack.c.l.b16 %v347
        %v763 = vunpack.c.h.b16 %v347
        %v764 = vunpack.c.l.b16 %v348
        %v765 = vunpack.c.h.b16 %v348
        %v766 = vunpack.c.l.b16 %v349
        %v767 = vunpack.c.h.b16 %v349
        %v768 = vunpack.c.l.b16 %v350
        %v769 = vunpack.c.h.b16 %v350
        %v770 = vunpack.c.l.b16 %v351
        %v771 = vunpack.c.h.b16 %v351
        %v772 = vunpack.c.l.b16 %v352
        %v773 = vunpack.c.h.b16 %v352
        %v774 = vunpack.c.l.b16 %v353
        %v775 = vunpack.c.h.b16 %v353
        %v776 = vunpack.c.l.b16 %v354
        %v777 = vunpack.c.h.b16 %v354
        %v778 = vunpack.c.l.b16 %v355
        %v779 = vunpack.c.h.b16 %v355
        %v780 = vunpack.c.l.b16 %v356
        %v781 = vunpack.c.h.b16 %v356
        %v782 = vunpack.c.l.b16 %v357
        %v783 = vunpack.c.h.b16 %v357
        %v784 = vunpack.c.l.b16 %v358
        %v785 = vunpack.c.h.b16 %v358
        %v786 = vunpack.c.l.b16 %v359
        %v787 = vunpack.c.h.b16 %v359
        %v788 = vunpack.c.l.b16 %v360
        %v789 = vunpack.c.h.b16 %v360
        %v790 = vunpack.c.l.b16 %v361
        %v791 = vunpack.c.h.b16 %v361
        %v792 = vunpack.c.l.b16 %v362
        %v793 = vunpack.c.h.b16 %v362
        %v794 = vunpack.c.l.b16 %v363
        %v795 = vunpack.c.h.b16 %v363
        %v796 = vunpack.c.l.b16 %v364
        %v797 = vunpack.c.h.b16 %v364
        %v798 = vunpack.c.l.b16 %v365
        %v799 = vunpack.c.h.b16 %v365
        %v800 = vunpack.c.l.b16 %v366
        %v801 = vunpack.c.h.b16 %v366
        %v802 = vunpack.c.l.b16 %v367
        %v803 = vunpack.c.h.b16 %v367
        %v804 = vunpack.c.l.b16 %v368
        %v805 = vunpack.c.h.b16 %v368
        %v806 = vunpack.c.l.b16 %v369
        %v807 = vunpack.c.h.b16 %v369
        %v808 = vunpack.c.l.b16 %v370
        %v809 = vunpack.c.h.b16 %v370
        %v810 = vunpack.c.l.b16 %v371
        %v811 = vunpack.c.h.b16 %v371
        %v812 = vunpack.c.l.b16 %v372
        %v813 = vunpack.c.h.b16 %v372
        %v814 = vunpack.c.l.b16 %v373
        %v815 = vunpack.c.h.b16 %v373
        %v816 = vunpack.c.l.b16 %v374
        %v817 = vunpack.c.h.b16 %v374
        %v818 = vunpack.c.l.b16 %v375
        %v819 = vunpack.c.h.b16 %v375
        %v820 = vunpack.c.l.b16 %v376
        %v821 = vunpack.c.h.b16 %v376
        %v822 = vunpack.c.l.b16 %v377
        %v823 = vunpack.c.h.b16 %v377
        %v824 = vunpack.c.l.b16 %v378
        %v825 = vunpack.c.h.b16 %v378
        %v826 = vunpack.c.l.b16 %v379
        %v827 = vunpack.c.h.b16 %v379
        %v828 = vunpack.c.l.b16 %v380
        %v829 = vunpack.c.h.b16 %v380
        %v830 = vunpack.c.l.b16 %v381
        %v831 = vunpack.c.h.b16 %v381
        %v832 = vunpack.c.l.b16 %v382
        %v833 = vunpack.c.h.b16 %v382
        %v834 = vunpack.c.l.b16 %v383
        %v835 = vunpack.c.h.b16 %v383
        %v836 = vunpack.c.l.b16 %v384
        %v837 = vunpack.c.h.b16 %v384
        %v838 = vunpack.c.l.b16 %v385
        %v839 = vunpack.c.h.b16 %v385
        %v840 = vunpack.c.l.b16 %v386
        %v841 = vunpack.c.h.b16 %v386
        %v842 = vunpack.c.l.b16 %v387
        %v843 = vunpack.c.h.b16 %v387
        %v844 = vunpack.c.l.b16 %v388
        %v845 = vunpack.c.h.b16 %v388
        %v846 = vunpack.c.l.b16 %v389
        %v847 = vunpack.c.h.b16 %v389
        %v848 = vunpack.c.l.b16 %v390
        %v849 = vunpack.c.h.b16 %v390
        %v850 = vunpack.c.l.b16 %v391
        %v851 = vunpack.c.h.b16 %v391
        %v852 = vunpack.c.l.b16 %v392
        %v853 = vunpack.c.h.b16 %v392
        %v854 = vunpack.c.l.b16 %v393
        %v855 = vunpack.c.h.b16 %v393
        %v856 = vunpack.c.l.b16 %v394
        %v857 = vunpack.c.h.b16 %v394
        %v858 = vunpack.c.l.b16 %v395
        %v859 = vunpack.c.h.b16 %v395
        %v860 = vunpack.c.l.b16 %v396
        %v861 = vunpack.c.h.b16 %v396
        %v862 = vunpack.c.l.b16 %v397
        %v863 = vunpack.c.h.b16 %v397
        %v864 = vunpack.c.l.b16 %v398
        %v865 = vunpack.c.h.b16 %v398
        %v866 = vunpack.c.l.b16 %v399
        %v867 = vunpack.c.h.b16 %v399
        %v868 = vunpack.c.l.b16 %v400
        %v869 = vunpack.c.h.b16 %v400
        %v870 = vunpack.c.l.b16 %v401
        %v871 = vunpack.c.h.b16 %v401
        %v872 = vunpack.c.l.b16 %v402
        %v873 = vunpack.c.h.b16 %v402
        %v874 = vunpack.c.l.b16 %v403
        %v875 = vunpack.c.h.b16 %v403
        %v876 = vunpack.c.l.b16 %v404
        %v877 = vunpack.c.h.b16 %v404
        %v878 = vunpack.c.l.b16 %v405
        %v879 = vunpack.c.h.b16 %v405
        %v880 = vunpack.c.l.b16 %v406
        %v881 = vunpack.c.h.b16 %v406
        %v882 = vunpack.c.l.b16 %v407
        %v883 = vunpack.c.h.b16 %v407
        %v884 = vunpack.c.l.b16 %v408
        %v885 = vunpack.c.h.b16 %v408
        %v886 = vunpack.c.l.b16 %v409
        %v887 = vunpack.c.h.b16 %v409
        %v888 = vunpack.c.l.b16 %v410
        %v889 = vunpack.c.h.b16 %v410
        %v890 = vunpack.c.l.b16 %v411
        %v891 = vunpack.c.h.b16 %v411
        %v892 = vpack.c.b16 %v576, %v572
        %v893 = vpack.c.b16 %v577, %v573
        %v894 = vpack.c.b16 %v578, %v574
        %v895 = vpack.c.b16 %v579, %v575
        %v896 = vpack.c.b16 %v584, %v580
        %v897 = vpack.c.b16 %v585, %v581
        %v898 = vpack.c.b16 %v586, %v582
        %v899 = vpack.c.b16 %v587, %v583
        %v900 = vpack.c.b16 %v592, %v588
        %v901 = vpack.c.b16 %v593, %v589
        %v902 = vpack.c.b16 %v594, %v590
        %v903 = vpack.c.b16 %v595, %v591
        %v904 = vpack.c.b16 %v600, %v596
        %v905 = vpack.c.b16 %v601, %v597
        %v906 = vpack.c.b16 %v602, %v598
        %v907 = vpack.c.b16 %v603, %v599
        %v908 = vpack.c.b16 %v608, %v604
        %v909 = vpack.c.b16 %v609, %v605
        %v910 = vpack.c.b16 %v610, %v606
        %v911 = vpack.c.b16 %v611, %v607
        %v912 = vpack.c.b16 %v616, %v612
        %v913 = vpack.c.b16 %v617, %v613
        %v914 = vpack.c.b16 %v618, %v614
        %v915 = vpack.c.b16 %v619, %v615
        %v916 = vpack.c.b16 %v624, %v620
        %v917 = vpack.c.b16 %v625, %v621
        %v918 = vpack.c.b16 %v626, %v622
        %v919 = vpack.c.b16 %v627, %v623
        %v920 = vpack.c.b16 %v632, %v628
        %v921 = vpack.c.b16 %v633, %v629
        %v922 = vpack.c.b16 %v634, %v630
        %v923 = vpack.c.b16 %v635, %v631
        %v924 = vpack.c.b16 %v640, %v636
        %v925 = vpack.c.b16 %v641, %v637
        %v926 = vpack.c.b16 %v642, %v638
        %v927 = vpack.c.b16 %v643, %v639
        %v928 = vpack.c.b16 %v648, %v644
        %v929 = vpack.c.b16 %v649, %v645
        %v930 = vpack.c.b16 %v650, %v646
        %v931 = vpack.c.b16 %v651, %v647
        %v932 = vpack.c.b16 %v656, %v652
        %v933 = vpack.c.b16 %v657, %v653
        %v934 = vpack.c.b16 %v658, %v654
        %v935 = vpack.c.b16 %v659, %v655
        %v936 = vpack.c.b16 %v664, %v660
        %v937 = vpack.c.b16 %v665, %v661
        %v938 = vpack.c.b16 %v666, %v662
        %v939 = vpack.c.b16 %v667, %v663
        %v940 = vpack.c.b16 %v672, %v668
        %v941 = vpack.c.b16 %v673, %v669
        %v942 = vpack.c.b16 %v674, %v670
        %v943 = vpack.c.b16 %v675, %v671
        %v944 = vpack.c.b16 %v680, %v676
        %v945 = vpack.c.b16 %v681, %v677
        %v946 = vpack.c.b16 %v682, %v678
        %v947 = vpack.c.b16 %v683, %v679
        %v948 = vpack.c.b16 %v688, %v684
        %v949 = vpack.c.b16 %v689, %v685
        %v950 = vpack.c.b16 %v690, %v686
        %v951 = vpack.c.b16 %v691, %v687
        %v952 = vpack.c.b16 %v696, %v692
        %v953 = vpack.c.b16 %v697, %v693
        %v954 = vpack.c.b16 %v698, %v694
        %v955 = vpack.c.b16 %v699, %v695
        %v956 = vpack.c.b16 %v704, %v700
        %v957 = vpack.c.b16 %v705, %v701
        %v958 = vpack.c.b16 %v706, %v702
        %v959 = vpack.c.b16 %v707, %v703
        %v960 = vpack.c.b16 %v712, %v708
        %v961 = vpack.c.b16 %v713, %v709
        %v962 = vpack.c.b16 %v714, %v710
        %v963 = vpack.c.b16 %v715, %v711
        %v964 = vpack.c.b16 %v720, %v716
        %v965 = vpack.c.b16 %v721, %v717
        %v966 = vpack.c.b16 %v722, %v718
        %v967 = vpack.c.b16 %v723, %v719
        %v968 = vpack.c.b16 %v728, %v724
        %v969 = vpack.c.b16 %v729, %v725
        %v970 = vpack.c.b16 %v730, %v726
        %v971 = vpack.c.b16 %v731, %v727
        %v972 = vpack.c.b16 %v736, %v732
        %v973 = vpack.c.b16 %v737, %v733
        %v974 = vpack.c.b16 %v738, %v734
        %v975 = vpack.c.b16 %v739, %v735
        %v976 = vpack.c.b16 %v744, %v740
        %v977 = vpack.c.b16 %v745, %v741
        %v978 = vpack.c.b16 %v746, %v742
        %v979 = vpack.c.b16 %v747, %v743
        %v980 = vpack.c.b16 %v752, %v748
        %v981 = vpack.c.b16 %v753, %v749
        %v982 = vpack.c.b16 %v754, %v750
        %v983 = vpack.c.b16 %v755, %v751
        %v984 = vpack.c.b16 %v760, %v756
        %v985 = vpack.c.b16 %v761, %v757
        %v986 = vpack.c.b16 %v762, %v758
        %v987 = vpack.c.b16 %v763, %v759
        %v988 = vpack.c.b16 %v768, %v764
        %v989 = vpack.c.b16 %v769, %v765
        %v990 = vpack.c.b16 %v770, %v766
        %v991 = vpack.c.b16 %v771, %v767
        %v992 = vpack.c.b16 %v776, %v772
        %v993 = vpack.c.b16 %v777, %v773
        %v994 = vpack.c.b16 %v778, %v774
        %v995 = vpack.c.b16 %v779, %v775
        %v996 = vpack.c.b16 %v784, %v780
        %v997 = vpack.c.b16 %v785, %v781
        %v998 = vpack.c.b16 %v786, %v782
        %v999 = vpack.c.b16 %v787, %v783
        %v1000 = vpack.c.b16 %v792, %v788
        %v1001 = vpack.c.b16 %v793, %v789
        %v1002 = vpack.c.b16 %v794, %v790
        %v1003 = vpack.c.b16 %v795, %v791
        %v1004 = vpack.c.b16 %v800, %v796
        %v1005 = vpack.c.b16 %v801, %v797
        %v1006 = vpack.c.b16 %v802, %v798
        %v1007 = vpack.c.b16 %v803, %v799
        %v1008 = vpack.c.b16 %v808, %v804
        %v1009 = vpack.c.b16 %v809, %v805
        %v1010 = vpack.c.b16 %v810, %v806
        %v1011 = vpack.c.b16 %v811, %v807
        %v1012 = vpack.c.b16 %v816, %v812
        %v1013 = vpack.c.b16 %v817, %v813
        %v1014 = vpack.c.b16 %v818, %v814
        %v1015 = vpack.c.b16 %v819, %v815
        %v1016 = vpack.c.b16 %v824, %v820
        %v1017 = vpack.c.b16 %v825, %v821
        %v1018 = vpack.c.b16 %v826, %v822
        %v1019 = vpack.c.b16 %v827, %v823
        %v1020 = vpack.c.b16 %v832, %v828
        %v1021 = vpack.c.b16 %v833, %v829
        %v1022 = vpack.c.b16 %v834, %v830
        %v1023 = vpack.c.b16 %v835, %v831
        %v1024 = vpack.c.b16 %v840, %v836
        %v1025 = vpack.c.b16 %v841, %v837
        %v1026 = vpack.c.b16 %v842, %v838
        %v1027 = vpack.c.b16 %v843, %v839
        %v1028 = vpack.c.b16 %v848, %v844
        %v1029 = vpack.c.b16 %v849, %v845
        %v1030 = vpack.c.b16 %v850, %v846
        %v1031 = vpack.c.b16 %v851, %v847
        %v1032 = vpack.c.b16 %v856, %v852
        %v1033 = vpack.c.b16 %v857, %v853
        %v1034 = vpack.c.b16 %v858, %v854
        %v1035 = vpack.c.b16 %v859, %v855
        %v1036 = vpack.c.b16 %v864, %v860
        %v1037 = vpack.c.b16 %v865, %v861
        %v1038 = vpack.c.b16 %v866, %v862
        %v1039 = vpack.c.b16 %v867, %v863
        %v1040 = vpack.c.b16 %v872, %v868
        %v1041 = vpack.c.b16 %v873, %v869
        %v1042 = vpack.c.b16 %v874, %v870
        %v1043 = vpack.c.b16 %v875, %v871
        %v1044 = vpack.c.b16 %v880, %v876
        %v1045 = vpack.c.b16 %v881, %v877
        %v1046 = vpack.c.b16 %v882, %v878
        %v1047 = vpack.c.b16 %v883, %v879
        %v1048 = vpack.c.b16 %v888, %v884
        %v1049 = vpack.c.b16 %v889, %v885
        %v1050 = vpack.c.b16 %v890, %v886
        %v1051 = vpack.c.b16 %v891, %v887
        %1212 = vmatprep.subr.bf16.mxu0 %v893
        %1213 = vmatpush1.bf16.msra.mxu0 %v892
        %1214 = vmatprep.subr.bf16.mxu0 %v897
        %1215 = vmatpush1.bf16.msra.mxu0 %v896
        %1216 = vmatprep.subr.bf16.mxu0 %v901
        %1217 = vmatpush1.bf16.msra.mxu0 %v900
        %1218 = vmatprep.subr.bf16.mxu0 %v905
        %1219 = vmatpush1.bf16.msra.mxu0 %v904
        %1220 = vmatprep.subr.bf16.mxu0 %v909
        %1221 = vmatpush1.bf16.msra.mxu0 %v908
        %1222 = vmatprep.subr.bf16.mxu0 %v913
        %1223 = vmatpush1.bf16.msra.mxu0 %v912
        %1224 = vmatprep.subr.bf16.mxu0 %v917
        %1225 = vmatpush1.bf16.msra.mxu0 %v916
        %1226 = vmatprep.subr.bf16.mxu0 %v921
        %1227 = vmatpush1.bf16.msra.mxu0 %v920
        %1228 = vmatprep.subr.bf16.mxu0 %v925
        %1229 = vmatpush1.bf16.msra.mxu0 %v924
        %1230 = vmatprep.subr.bf16.mxu0 %v929
        %1231 = vmatpush1.bf16.msra.mxu0 %v928
        %1232 = vmatprep.subr.bf16.mxu0 %v933
        %1233 = vmatpush1.bf16.msra.mxu0 %v932
        %1234 = vmatprep.subr.bf16.mxu0 %v937
        %1235 = vmatpush1.bf16.msra.mxu0 %v936
        %1236 = vmatprep.subr.bf16.mxu0 %v941
        %1237 = vmatpush1.bf16.msra.mxu0 %v940
        %1238 = vmatprep.subr.bf16.mxu0 %v945
        %1239 = vmatpush1.bf16.msra.mxu0 %v944
        %1240 = vmatprep.subr.bf16.mxu0 %v949
        %1241 = vmatpush1.bf16.msra.mxu0 %v948
        %1242 = vmatprep.subr.bf16.mxu0 %v953
        %1243 = vmatpush1.bf16.msra.mxu0 %v952
        %1244 = vmatprep.mubr.bf16.mxu0 %v228
        %1245 = vmatmul.mubr.bf16.gmra.mrb[0].mxu0 %v212
        %v1246 = vpop.f32.mrb[0].mxu0
        %v1247 = vadd.f32 0.0, %v1246
        %v1248 = vpop.f32.mrb[0].mxu0
        %v1249 = vadd.f32 0.0, %v1248
        %v1250 = vpop.f32.mrb[0].mxu0
        %v1251 = vpop.f32.mrb[0].mxu0
        %1252 = vdwg.mxu0
        %1253 = vmatprep.subr.bf16.mxu0 %v957
        %1254 = vmatpush1.bf16.msra.mxu0 %v956
        %1255 = vmatprep.subr.bf16.mxu0 %v961
        %1256 = vmatpush1.bf16.msra.mxu0 %v960
        %1257 = vmatprep.subr.bf16.mxu0 %v965
        %1258 = vmatpush1.bf16.msra.mxu0 %v964
        %1259 = vmatprep.subr.bf16.mxu0 %v969
        %1260 = vmatpush1.bf16.msra.mxu0 %v968
        %1261 = vmatprep.subr.bf16.mxu0 %v973
        %1262 = vmatpush1.bf16.msra.mxu0 %v972
        %1263 = vmatprep.subr.bf16.mxu0 %v977
        %1264 = vmatpush1.bf16.msra.mxu0 %v976
        %1265 = vmatprep.subr.bf16.mxu0 %v981
        %1266 = vmatpush1.bf16.msra.mxu0 %v980
        %1267 = vmatprep.subr.bf16.mxu0 %v985
        %1268 = vmatpush1.bf16.msra.mxu0 %v984
        %1269 = vmatprep.subr.bf16.mxu0 %v989
        %1270 = vmatpush1.bf16.msra.mxu0 %v988
        %1271 = vmatprep.subr.bf16.mxu0 %v993
        %1272 = vmatpush1.bf16.msra.mxu0 %v992
        %1273 = vmatprep.subr.bf16.mxu0 %v997
        %1274 = vmatpush1.bf16.msra.mxu0 %v996
        %1275 = vmatprep.subr.bf16.mxu0 %v1001
        %1276 = vmatpush1.bf16.msra.mxu0 %v1000
        %1277 = vmatprep.subr.bf16.mxu0 %v1005
        %1278 = vmatpush1.bf16.msra.mxu0 %v1004
        %1279 = vmatprep.subr.bf16.mxu0 %v1009
        %1280 = vmatpush1.bf16.msra.mxu0 %v1008
        %1281 = vmatprep.subr.bf16.mxu0 %v1013
        %1282 = vmatpush1.bf16.msra.mxu0 %v1012
        %1283 = vmatprep.subr.bf16.mxu0 %v1017
        %1284 = vmatpush1.bf16.msra.mxu0 %v1016
        %1285 = vmatprep.mubr.bf16.mxu0 %v245
        %1286 = vmatmul.mubr.bf16.gmra.mrb[0].mxu0 %v233
        %v1287 = vpop.f32.mrb[0].mxu0
        %v1288 = vadd.f32 %v1247, %v1287
        %v1289 = vpop.f32.mrb[0].mxu0
        %v1290 = vadd.f32 %v1249, %v1289
        %v1291 = vpop.f32.mrb[0].mxu0
        %v1292 = vpop.f32.mrb[0].mxu0
        %1293 = vdwg.mxu0
        %1294 = vmatprep.subr.bf16.mxu0 %v1021
        %1295 = vmatpush1.bf16.msra.mxu0 %v1020
        %1296 = vmatprep.subr.bf16.mxu0 %v1025
        %1297 = vmatpush1.bf16.msra.mxu0 %v1024
        %1298 = vmatprep.subr.bf16.mxu0 %v1029
        %1299 = vmatpush1.bf16.msra.mxu0 %v1028
        %1300 = vmatprep.subr.bf16.mxu0 %v1033
        %1301 = vmatpush1.bf16.msra.mxu0 %v1032
        %1302 = vmatprep.subr.bf16.mxu0 %v1037
        %1303 = vmatpush1.bf16.msra.mxu0 %v1036
        %1304 = vmatprep.subr.bf16.mxu0 %v1041
        %1305 = vmatpush1.bf16.msra.mxu0 %v1040
        %1306 = vmatprep.subr.bf16.mxu0 %v1045
        %1307 = vmatpush1.bf16.msra.mxu0 %v1044
        %1308 = vmatprep.subr.bf16.mxu0 %v1049
        %1309 = vmatpush1.bf16.msra.mxu0 %v1048
        %1310 = vmatprep.subr.bf16.mxu0 0
        %1311 = vmatpush1.bf16.msra.mxu0 0
        %1312 = vmatprep.subr.bf16.mxu0 0
        %1313 = vmatpush1.bf16.msra.mxu0 0
        %1314 = vmatprep.subr.bf16.mxu0 0
        %1315 = vmatpush1.bf16.msra.mxu0 0
        %1316 = vmatprep.subr.bf16.mxu0 0
        %1317 = vmatpush1.bf16.msra.mxu0 0
        %1318 = vmatprep.subr.bf16.mxu0 0
        %1319 = vmatpush1.bf16.msra.mxu0 0
        %1320 = vmatprep.subr.bf16.mxu0 0
        %1321 = vmatpush1.bf16.msra.mxu0 0
        %1322 = vmatprep.subr.bf16.mxu0 0
        %1323 = vmatpush1.bf16.msra.mxu0 0
        %1324 = vmatprep.subr.bf16.mxu0 0
        %1325 = vmatpush1.bf16.msra.mxu0 0
        %1326 = vmatprep.mubr.bf16.mxu0 0
        %1327 = vmatmul.mubr.bf16.gmra.mrb[0].mxu0 %v250
        %v1328 = vpop.f32.mrb[0].mxu0
        %v1329 = vadd.f32 %v1288, %v1328
        %v1330 = vpop.f32.mrb[0].mxu0
        %v1331 = vadd.f32 %v1290, %v1330
        %v1332 = vpop.f32.mrb[0].mxu0
        %v1333 = vpop.f32.mrb[0].mxu0
        %1334 = vdwg.mxu0
        %1335 = vmatprep.subr.bf16.mxu0 %v895
        %1336 = vmatpush1.bf16.msra.mxu0 %v894
        %1337 = vmatprep.subr.bf16.mxu0 %v899
        %1338 = vmatpush1.bf16.msra.mxu0 %v898
        %1339 = vmatprep.subr.bf16.mxu0 %v903
        %1340 = vmatpush1.bf16.msra.mxu0 %v902
        %1341 = vmatprep.subr.bf16.mxu0 %v907
        %1342 = vmatpush1.bf16.msra.mxu0 %v906
        %1343 = vmatprep.subr.bf16.mxu0 %v911
        %1344 = vmatpush1.bf16.msra.mxu0 %v910
        %1345 = vmatprep.subr.bf16.mxu0 %v915
        %1346 = vmatpush1.bf16.msra.mxu0 %v914
        %1347 = vmatprep.subr.bf16.mxu0 %v919
        %1348 = vmatpush1.bf16.msra.mxu0 %v918
        %1349 = vmatprep.subr.bf16.mxu0 %v923
        %1350 = vmatpush1.bf16.msra.mxu0 %v922
        %1351 = vmatprep.subr.bf16.mxu0 %v927
        %1352 = vmatpush1.bf16.msra.mxu0 %v926
        %1353 = vmatprep.subr.bf16.mxu0 %v931
        %1354 = vmatpush1.bf16.msra.mxu0 %v930
        %1355 = vmatprep.subr.bf16.mxu0 %v935
        %1356 = vmatpush1.bf16.msra.mxu0 %v934
        %1357 = vmatprep.subr.bf16.mxu0 %v939
        %1358 = vmatpush1.bf16.msra.mxu0 %v938
        %1359 = vmatprep.subr.bf16.mxu0 %v943
        %1360 = vmatpush1.bf16.msra.mxu0 %v942
        %1361 = vmatprep.subr.bf16.mxu0 %v947
        %1362 = vmatpush1.bf16.msra.mxu0 %v946
        %1363 = vmatprep.subr.bf16.mxu0 %v951
        %1364 = vmatpush1.bf16.msra.mxu0 %v950
        %1365 = vmatprep.subr.bf16.mxu0 %v955
        %1366 = vmatpush1.bf16.msra.mxu0 %v954
        %1367 = vmatprep.mubr.bf16.mxu0 %v228
        %1368 = vmatmul.mubr.bf16.gmra.mrb[0].mxu0 %v212
        %v1369 = vpop.f32.mrb[0].mxu0
        %v1370 = vadd.f32 0.0, %v1369
        %v1371 = vpop.f32.mrb[0].mxu0
        %v1372 = vadd.f32 0.0, %v1371
        %v1373 = vpop.f32.mrb[0].mxu0
        %v1374 = vpop.f32.mrb[0].mxu0
        %1375 = vdwg.mxu0
        %1376 = vmatprep.subr.bf16.mxu0 %v959
        %1377 = vmatpush1.bf16.msra.mxu0 %v958
        %1378 = vmatprep.subr.bf16.mxu0 %v963
        %1379 = vmatpush1.bf16.msra.mxu0 %v962
        %1380 = vmatprep.subr.bf16.mxu0 %v967
        %1381 = vmatpush1.bf16.msra.mxu0 %v966
        %1382 = vmatprep.subr.bf16.mxu0 %v971
        %1383 = vmatpush1.bf16.msra.mxu0 %v970
        %1384 = vmatprep.subr.bf16.mxu0 %v975
        %1385 = vmatpush1.bf16.msra.mxu0 %v974
        %1386 = vmatprep.subr.bf16.mxu0 %v979
        %1387 = vmatpush1.bf16.msra.mxu0 %v978
        %1388 = vmatprep.subr.bf16.mxu0 %v983
        %1389 = vmatpush1.bf16.msra.mxu0 %v982
        %1390 = vmatprep.subr.bf16.mxu0 %v987
        %1391 = vmatpush1.bf16.msra.mxu0 %v986
        %1392 = vmatprep.subr.bf16.mxu0 %v991
        %1393 = vmatpush1.bf16.msra.mxu0 %v990
        %1394 = vmatprep.subr.bf16.mxu0 %v995
        %1395 = vmatpush1.bf16.msra.mxu0 %v994
        %1396 = vmatprep.subr.bf16.mxu0 %v999
        %1397 = vmatpush1.bf16.msra.mxu0 %v998
        %1398 = vmatprep.subr.bf16.mxu0 %v1003
        %1399 = vmatpush1.bf16.msra.mxu0 %v1002
        %1400 = vmatprep.subr.bf16.mxu0 %v1007
        %1401 = vmatpush1.bf16.msra.mxu0 %v1006
        %1402 = vmatprep.subr.bf16.mxu0 %v1011
        %1403 = vmatpush1.bf16.msra.mxu0 %v1010
        %1404 = vmatprep.subr.bf16.mxu0 %v1015
        %1405 = vmatpush1.bf16.msra.mxu0 %v1014
        %1406 = vmatprep.subr.bf16.mxu0 %v1019
        %1407 = vmatpush1.bf16.msra.mxu0 %v1018
        %1408 = vmatprep.mubr.bf16.mxu0 %v245
        %1409 = vmatmul.mubr.bf16.gmra.mrb[0].mxu0 %v233
        %v1410 = vpop.f32.mrb[0].mxu0
        %v1411 = vadd.f32 %v1370, %v1410
        %v1412 = vpop.f32.mrb[0].mxu0
        %v1413 = vadd.f32 %v1372, %v1412
        %v1414 = vpop.f32.mrb[0].mxu0
        %v1415 = vpop.f32.mrb[0].mxu0
        %1416 = vdwg.mxu0
        %1417 = vmatprep.subr.bf16.mxu0 %v1023
        %1418 = vmatpush1.bf16.msra.mxu0 %v1022
        %1419 = vmatprep.subr.bf16.mxu0 %v1027
        %1420 = vmatpush1.bf16.msra.mxu0 %v1026
        %1421 = vmatprep.subr.bf16.mxu0 %v1031
        %1422 = vmatpush1.bf16.msra.mxu0 %v1030
        %1423 = vmatprep.subr.bf16.mxu0 %v1035
        %1424 = vmatpush1.bf16.msra.mxu0 %v1034
        %1425 = vmatprep.subr.bf16.mxu0 %v1039
        %1426 = vmatpush1.bf16.msra.mxu0 %v1038
        %1427 = vmatprep.subr.bf16.mxu0 %v1043
        %1428 = vmatpush1.bf16.msra.mxu0 %v1042
        %1429 = vmatprep.subr.bf16.mxu0 %v1047
        %1430 = vmatpush1.bf16.msra.mxu0 %v1046
        %1431 = vmatprep.subr.bf16.mxu0 %v1051
        %1432 = vmatpush1.bf16.msra.mxu0 %v1050
        %1433 = vmatprep.subr.bf16.mxu0 0
        %1434 = vmatpush1.bf16.msra.mxu0 0
        %1435 = vmatprep.subr.bf16.mxu0 0
        %1436 = vmatpush1.bf16.msra.mxu0 0
        %1437 = vmatprep.subr.bf16.mxu0 0
        %1438 = vmatpush1.bf16.msra.mxu0 0
        %1439 = vmatprep.subr.bf16.mxu0 0
        %1440 = vmatpush1.bf16.msra.mxu0 0
        %1441 = vmatprep.subr.bf16.mxu0 0
        %1442 = vmatpush1.bf16.msra.mxu0 0
        %1443 = vmatprep.subr.bf16.mxu0 0
        %1444 = vmatpush1.bf16.msra.mxu0 0
        %1445 = vmatprep.subr.bf16.mxu0 0
        %1446 = vmatpush1.bf16.msra.mxu0 0
        %1447 = vmatprep.subr.bf16.mxu0 0
        %1448 = vmatpush1.bf16.msra.mxu0 0
        %1449 = vmatprep.mubr.bf16.mxu0 0
        %1450 = vmatmul.mubr.bf16.gmra.mrb[0].mxu0 %v250
        %v1451 = vpop.f32.mrb[0].mxu0
        %v1452 = vadd.f32 %v1411, %v1451
        %v1453 = vpop.f32.mrb[0].mxu0
        %v1454 = vadd.f32 %v1413, %v1453
        %v1455 = vpop.f32.mrb[0].mxu0
        %v1456 = vpop.f32.mrb[0].mxu0
        %1457 = vdwg.mxu0
        %v1458 = vld [vmem:[%s2] sm:$0xf]
        %v1460 = vlaneseq
        %v1461 = vshrl.u32 %v1460, 7
        %v1462 = vsub.s32 0, %v1461
        %v1463 = vrot.slane %v1458, %v1462
        %v1464 = vlaneseq
        %v1465 = vshrl.u32 %v1464, 7
        %v1466 = vsub.s32 1, %v1465
        %v1467 = vrot.slane %v1458, %v1466
        %v1468 = vlaneseq
        %v1469 = vshrl.u32 %v1468, 7
        %v1470 = vsub.s32 2, %v1469
        %v1471 = vrot.slane %v1458, %v1470
        %v1472 = vlaneseq
        %v1473 = vshrl.u32 %v1472, 7
        %v1474 = vsub.s32 3, %v1473
        %v1475 = vrot.slane %v1458, %v1474
        %v1480 = vmul.f32 %v1329, %v1463
        %v1481 = vmul.f32 %v1331, %v1467
        %v1482 = vmul.f32 %v1452, %v1471
        %v1483 = vmul.f32 %v1454, %v1475
        %v1484 = vld [vmem:[%s3] sm:$0xf]
        %v1486 = vlaneseq
        %v1487 = vshrl.u32 %v1486, 7
        %v1488 = vsub.s32 0, %v1487
        %v1489 = vrot.slane %v1484, %v1488
        %v1490 = vlaneseq
        %v1491 = vshrl.u32 %v1490, 7
        %v1492 = vsub.s32 1, %v1491
        %v1493 = vrot.slane %v1484, %v1492
        %v1494 = vlaneseq
        %v1495 = vshrl.u32 %v1494, 7
        %v1496 = vsub.s32 2, %v1495
        %v1497 = vrot.slane %v1484, %v1496
        %v1498 = vlaneseq
        %v1499 = vshrl.u32 %v1498, 7
        %v1500 = vsub.s32 3, %v1499
        %v1501 = vrot.slane %v1484, %v1500
        %v1506 = vadd.f32 %v1480, %v1489
        %v1507 = vadd.f32 %v1481, %v1493
        %v1508 = vadd.f32 %v1482, %v1497
        %v1509 = vadd.f32 %v1483, %v1501
        %v1510 = vmax.f32 %v1506, 0.0
        %v1511 = vmax.f32 %v1507, 0.0
        %v1512 = vmax.f32 %v1508, 0.0
        %v1513 = vmax.f32 %v1509, 0.0
        %v1514 = vpack.c.bf16 %v1510, %v1510
        %v1515 = vpack.c.bf16 %v1511, %v1511
        %v1516 = vpack.c.bf16 %v1512, %v1512
        %v1517 = vpack.c.bf16 %v1513, %v1513
        %v1522 = vunpack.c.l.b16 %v1514
        %v1523 = vunpack.c.l.b16 %v1515
        %v1524 = vunpack.c.l.b16 %v1516
        %v1525 = vunpack.c.l.b16 %v1517
        %v1526 = vpack.c.b16 %v1523, %v1522
        %v1527 = vpack.c.b16 %v1525, %v1524
        %1530 = vst [vmem:[%s205] sm:$0xff] %v1526
        %1531 = vst [vmem:[%s205 + $0x8] sm:$0xff] %v1527
        %s1532 = sand.u32 %s116, 1
        %s1533 = scalar_lea.sflag [#allocation4], %s1532
        %s1534 = sand.u32 %s116, 1
        %s1535 = smul.addr %s1534, 16
        %s1536 = scalar_lea.vmem [#allocation5], %s1535
        // Predicated region
        $region41: #{tpu_custom_call.1} parent=35 // pred_check
          %p1537 = pneg %p126
        $region42: #{tpu_custom_call.1} parent=35 // pred_check_branch
          %1539 = sbr.rel (%p1537) target = $region44
        $region43: #{tpu_custom_call.1} parent=35 // pred_region
          %s1541 = ssub.s32 256, 256
          %1542 = vsyncadd %s1533, %s1541
          %s1543 = smul.addr %s19, 4
          %s1544 = smul.addr %s1543, 64
          %s1545 = scalar_lea.hbm %s4, %s1544
          %s1547 = sshll.u32 %s1536, 4
          %s1548 = int_to_ptr.vmem [resolvable:$true] %s1547
          %1550 = dma.vmem_to_hbm [thread:$0]  %s1548, 256, %s1545, %s1533
        $region44: #{tpu_custom_call.1} parent=35 // pred_fallthru
          _
      $region36: #{tpu_custom_call.1} parent=5 // pred_fallthru
        _
      %p1551 = scmp.le.s32.totalorder 2, %s14
      // Predicated region
      $region45: #{tpu_custom_call.1} parent=5 // pred_check
        %p1552 = pneg %p1551
      $region46: #{tpu_custom_call.1} parent=5 // pred_check_branch
        %1554 = sbr.rel (%p1552) target = $region48
      $region47: #{tpu_custom_call.1} parent=5 // pred_region
        %s1555 = ssub.s32 %s14, 2
        // Predicated region
        $region49: #{tpu_custom_call.1} parent=47 // pred_check
          %p1556 = pneg %p132
        $region50: #{tpu_custom_call.1} parent=47 // pred_check_branch
          %1558 = sbr.rel (%p1556) target = $region52
        $region51: #{tpu_custom_call.1} parent=47 // pred_region
          %s1559 = sand.u32 %s117, 1
          %s1560 = scalar_lea.sflag [#allocation4], %s1559
          %s1561 = sand.u32 %s117, 1
          %s1562 = smul.addr %s1561, 16
          %s1563 = scalar_lea.vmem [#allocation5], %s1562
          %1564 = dma.done %s1560, 256
        $region52: #{tpu_custom_call.1} parent=47 // pred_fallthru
          _
      $region48: #{tpu_custom_call.1} parent=5 // pred_fallthru
        _
    $region6: #{tpu_custom_call.1} parent=1 // loop_footer
      %s18 = sadd.s32 1, %s14
    $region7: #{tpu_custom_call.1} parent=1 // loop_footer_branch
      %13 = sbr.rel target = $region3
    $region8: #{tpu_custom_call.1} parent=1 // loop_exit
      _
    %1565 = vsyncpa [#allocation3], 1
    %s1566 = scalar_lea.sflag [#allocation3], 1
    %1567 = vsyncpa %s1566, 1
    %1568 = vsyncpa [#allocation4], 1
    %s1569 = scalar_lea.sflag [#allocation4], 1
    %1570 = vsyncpa %s1569, 1

</llo_original>
